<compile_context>
chip_gen: v7x
topology: tpu7x:2x2x1
jax: 0.10.0
libtpu: 0.0.40
codegen_flags: <defaults>
</compile_context>

<pallas_src>
import math
from functools import partial

import jax
import jax.numpy as jnp
from jax.experimental import pallas as pl
from jax.experimental.pallas import tpu as pltpu


# ----------------------------------------------------------------------------
# small helpers
# ----------------------------------------------------------------------------
def _layernorm(v, w, b, eps):
    mu = jnp.mean(v, axis=-1, keepdims=True)
    var = jnp.mean((v - mu) ** 2, axis=-1, keepdims=True)
    return (v - mu) * jax.lax.rsqrt(var + eps) * w + b


def _gelu_exact(v):
    # nn.GELU() (erf-based), as used by get_act_fn('gelu')
    return 0.5 * v * (1.0 + jax.lax.erf(v * (1.0 / math.sqrt(2.0))))


def _vmem_resident_spec():
    # Whole array resident in VMEM for the kernel's lifetime: one copy, not
    # pipelined / double-buffered (constant-index weights & biases).
    return pl.BlockSpec(memory_space=pltpu.MemorySpace.VMEM)


def _vmem_limit_bytes():
    # Leave headroom below physical VMEM (v7x: 64 MiB -> ~48 MiB requested,
    # v6e/v5e: 128 MiB -> ~96-100 MiB requested).
    try:
        cap = getattr(pltpu.get_tpu_info(), "vmem_capacity_bytes", None)
        if cap:
            return int(min(cap * 3 // 4, 100 * 1024 * 1024))
    except Exception:
        pass
    return 48 * 1024 * 1024


# ----------------------------------------------------------------------------
# kernel 1: LN1 + fused (pre-scaled) QKV projection + head split
# ----------------------------------------------------------------------------
def _ln1_qkv_kernel(x_ref, ln1_w_ref, ln1_b_ref, wqkv_ref, bqkv_ref,
                    q_ref, k_ref, v_ref, *, num_heads, head_dim, eps):
    ts, B, D = x_ref.shape
    h = _layernorm(x_ref[...], ln1_w_ref[0], ln1_b_ref[0], eps)       # (ts,B,D)
    h2d = h.reshape(ts * B, D).astype(jnp.bfloat16)                   # s-major rows
    qkv = jnp.dot(h2d, wqkv_ref[...],
                  preferred_element_type=jnp.float32) + bqkv_ref[0]   # (ts*B, 3D)

    def to_heads(t):                       # (ts*B, D) -> (B*NH, ts, hd)
        t = t.reshape(ts, B, num_heads, head_dim)
        t = jnp.transpose(t, (1, 2, 0, 3))
        return t.reshape(B * num_heads, ts, head_dim)

    q_ref[...] = to_heads(qkv[:, :D]).astype(q_ref.dtype)       # already scaled
    k_ref[...] = to_heads(qkv[:, D:2 * D]).astype(k_ref.dtype)
    v_ref[...] = to_heads(qkv[:, 2 * D:]).astype(v_ref.dtype)


# ----------------------------------------------------------------------------
# kernel 2: flash attention (online softmax over KV tiles)
# ----------------------------------------------------------------------------
def _flash_attn_kernel(q_ref, k_ref, v_ref, o_ref, m_sc, l_sc, acc_sc):
    ki = pl.program_id(2)

    @pl.when(ki == 0)
    def _():
        m_sc[...] = jnp.full_like(m_sc, -jnp.inf)
        l_sc[...] = jnp.zeros_like(l_sc)
        acc_sc[...] = jnp.zeros_like(acc_sc)

    q = q_ref[0]                                   # (tq, hd) bf16, pre-scaled
    k = k_ref[0]                                   # (tk, hd) bf16
    s = jax.lax.dot_general(q, k, (((1,), (1,)), ((), ())),
                            preferred_element_type=jnp.float32)       # (tq, tk)

    m_prev = m_sc[...]
    m_new = jnp.maximum(m_prev, jnp.max(s, axis=-1, keepdims=True))
    alpha = jnp.exp(m_prev - m_new)
    p = jnp.exp(s - m_new)
    l_sc[...] = alpha * l_sc[...] + jnp.sum(p, axis=-1, keepdims=True)
    acc_sc[...] = alpha * acc_sc[...] + jnp.dot(
        p.astype(jnp.bfloat16), v_ref[0], preferred_element_type=jnp.float32)
    m_sc[...] = m_new

    @pl.when(ki == pl.num_programs(2) - 1)
    def _():
        # deferred softmax normalization: one reciprocal per row, on ctx only
        o_ref[0] = (acc_sc[...] * pl.reciprocal(l_sc[...], approx=True)
                    ).astype(o_ref.dtype)


# ----------------------------------------------------------------------------
# kernel 3: out-projection + residual 1 + LN2 + I-streamed MLP + residual 2
# ----------------------------------------------------------------------------
def _proj_mlp_kernel(ctx_ref, x_ref, wo_ref, bo_ref, ln2_w_ref, ln2_b_ref,
                     wfc_ref, bfc_ref, wproj_ref, bproj_ref, o_ref,
                     h2_sc, acc_sc, *, num_heads, head_dim, eps):
    ii = pl.program_id(1)
    ts, B, D = x_ref.shape

    @pl.when(ii == 0)
    def _():
        # attention out_proj + residual + LN2, once per sequence tile
        ctx = ctx_ref[...].reshape(B, num_heads, ts, head_dim)         # bf16
        ctx = jnp.transpose(ctx, (2, 0, 1, 3)).reshape(ts * B, D)      # (s,b,D)
        attn = jnp.dot(ctx, wo_ref[...],
                       preferred_element_type=jnp.float32) + bo_ref[0]
        x1 = x_ref[...].reshape(ts * B, D) + attn                      # resid 1
        h2_sc[...] = _layernorm(x1, ln2_w_ref[0], ln2_b_ref[0], eps
                                ).astype(jnp.bfloat16)
        # residual 2 and the final projection bias folded into the accumulator
        acc_sc[...] = x1 + bproj_ref[0]

    ff = jnp.dot(h2_sc[...], wfc_ref[...],
                 preferred_element_type=jnp.float32) + bfc_ref[0]      # (ts*B,tI)
    ff = _gelu_exact(ff)
    acc_sc[...] += jnp.dot(ff.astype(jnp.bfloat16), wproj_ref[...],
                           preferred_element_type=jnp.float32)

    @pl.when(ii == pl.num_programs(1) - 1)
    def _():
        o_ref[...] = acc_sc[...].reshape(ts, B, D)


# ----------------------------------------------------------------------------
# parameter prep (PyTorch layout -> kernel layout, bf16 weights, scale folded)
# ----------------------------------------------------------------------------
def _prepare_params(p, num_heads):
    D = p["ln1_w"].shape[0]
    hd = D // num_heads
    I = p["b_fc"].shape[0]
    scale = 1.0 / math.sqrt(hd)

    # in_proj weight (3D, D): rows interleaved per-head as [q_h | k_h | v_h]
    # (the module reshapes its output to (..., nh, 3*hd) before splitting).
    w_r = p["w_in"].reshape(num_heads, 3, hd, D)
    b_r = p["b_in"].reshape(num_heads, 3, hd)
    wq = w_r[:, 0].reshape(D, D) * scale          # fold 1/sqrt(hd) into q
    wk = w_r[:, 1].reshape(D, D)
    wv = w_r[:, 2].reshape(D, D)
    wqkv = jnp.concatenate([wq, wk, wv], axis=0).T.astype(jnp.bfloat16)  # (D,3D)
    bqkv = jnp.concatenate([b_r[:, 0].reshape(D) * scale,
                            b_r[:, 1].reshape(D),
                            b_r[:, 2].reshape(D)]).reshape(1, 3 * D)

    return dict(
        ln1_w=p["ln1_w"].reshape(1, D), ln1_b=p["ln1_b"].reshape(1, D),
        wqkv=wqkv, bqkv=bqkv.astype(jnp.float32),
        wo=p["w_out"].T.astype(jnp.bfloat16),        # (D, D) for ctx @ wo
        bo=p["b_out"].reshape(1, D),
        ln2_w=p["ln2_w"].reshape(1, D), ln2_b=p["ln2_b"].reshape(1, D),
        wfc=p["w_fc"].T.astype(jnp.bfloat16),        # (D, I)
        bfc=p["b_fc"].reshape(1, I),
        wproj=p["w_proj"].T.astype(jnp.bfloat16),    # (I, D)
        bproj=p["b_proj"].reshape(1, D),
    )


# ----------------------------------------------------------------------------
# wrapper
# ----------------------------------------------------------------------------
def visual_attention_block(x_sbd, params, *, num_heads, eps=1e-5,
                           seq_tile=256, kv_tile=256, i_tile=1024):
    """x_sbd: (S, B, D) float32, like the PyTorch module. Returns (S, B, D)."""
    S, B, D = x_sbd.shape
    assert D % num_heads == 0
    hd = D // num_heads
    BH = B * num_heads
    I = params["b_fc"].shape[0]

    # Tile sizes (clamped to the problem). Use 128-aligned tiles on v5e,
    # 256-aligned on v6e, ~half the v6e sizes on v7x.
    ts = min(seq_tile, S)       # seq tile (kernels 1 & 3, q tile of the flash loop)
    tk = min(kv_tile, S)        # kv tile of the flash loop
    tI = min(i_tile, I)         # intermediate tile for MLP weight streaming
    assert S % ts == 0 and S % tk == 0 and I % tI == 0
    assert (ts % 8 == 0 or ts == S) and (tk % 8 == 0 or tk == S)
    assert (tI % 128 == 0 or tI == I)

    x = x_sbd.astype(jnp.float32)
    kp = _prepare_params(params, num_heads)
    vlim = _vmem_limit_bytes()
    res = _vmem_resident_spec

    # --- kernel 1: LN1 + fused QKV projection + head split ------------------
    q, k, v = pl.pallas_call(
        partial(_ln1_qkv_kernel, num_heads=num_heads, head_dim=hd, eps=eps),
        grid=(S // ts,),
        in_specs=[pl.BlockSpec((ts, B, D), lambda si: (si, 0, 0)),   # native (S,B,D)
                  res(), res(), res(), res()],
        out_specs=(pl.BlockSpec((BH, ts, hd), lambda si: (0, si, 0)),) * 3,
        out_shape=(jax.ShapeDtypeStruct((BH, S, hd), jnp.bfloat16),) * 3,
        compiler_params=pltpu.CompilerParams(
            dimension_semantics=("parallel",), vmem_limit_bytes=vlim),
    )(x, kp["ln1_w"], kp["ln1_b"], kp["wqkv"], kp["bqkv"])

    # --- kernel 2: flash attention ------------------------------------------
    ctx = pl.pallas_call(
        _flash_attn_kernel,
        grid=(BH, S // ts, S // tk),
        in_specs=[pl.BlockSpec((1, ts, hd), lambda bh, qi, ki: (bh, qi, 0)),
                  pl.BlockSpec((1, tk, hd), lambda bh, qi, ki: (bh, ki, 0)),
                  pl.BlockSpec((1, tk, hd), lambda bh, qi, ki: (bh, ki, 0))],
        out_specs=pl.BlockSpec((1, ts, hd), lambda bh, qi, ki: (bh, qi, 0)),
        out_shape=jax.ShapeDtypeStruct((BH, S, hd), jnp.bfloat16),
        scratch_shapes=[pltpu.VMEM((ts, 1), jnp.float32),     # running max
                        pltpu.VMEM((ts, 1), jnp.float32),     # running sum
                        pltpu.VMEM((ts, hd), jnp.float32)],   # accumulator
        compiler_params=pltpu.CompilerParams(
            dimension_semantics=("parallel", "parallel", "arbitrary"),
            vmem_limit_bytes=vlim),
    )(q, k, v)

    # --- kernel 3: out_proj + residual + LN2 + I-streamed MLP + residual ----
    out = pl.pallas_call(
        partial(_proj_mlp_kernel, num_heads=num_heads, head_dim=hd, eps=eps),
        grid=(S // ts, I // tI),                 # I (reduction) axis last
        in_specs=[pl.BlockSpec((BH, ts, hd), lambda si, ii: (0, si, 0)),  # ctx
                  pl.BlockSpec((ts, B, D), lambda si, ii: (si, 0, 0)),    # x
                  res(),                                                  # wo
                  res(),                                                  # bo
                  res(),                                                  # ln2_w
                  res(),                                                  # ln2_b
                  pl.BlockSpec((D, tI), lambda si, ii: (0, ii)),          # wfc tile
                  pl.BlockSpec((1, tI), lambda si, ii: (0, ii)),          # bfc tile
                  pl.BlockSpec((tI, D), lambda si, ii: (ii, 0)),          # wproj tile
                  res()],                                                 # bproj
        out_specs=pl.BlockSpec((ts, B, D), lambda si, ii: (si, 0, 0)),
        out_shape=jax.ShapeDtypeStruct((S, B, D), jnp.float32),
        scratch_shapes=[pltpu.VMEM((ts * B, D), jnp.bfloat16),   # h2 = LN2(x1)
                        pltpu.VMEM((ts * B, D), jnp.float32)],   # MLP accumulator
        compiler_params=pltpu.CompilerParams(
            dimension_semantics=("parallel", "arbitrary"),
            vmem_limit_bytes=vlim),
    )(ctx, x, kp["wo"], kp["bo"], kp["ln2_w"], kp["ln2_b"],
      kp["wfc"], kp["bfc"], kp["wproj"], kp["bproj"])
    return out


# ----------------------------------------------------------------------------
# synthetic params (PyTorch module layout) + pure-JAX reference
# ----------------------------------------------------------------------------
def make_params(key, d_model, num_heads, mlp_ratio=4.0):
    D = d_model
    I = int(D * mlp_ratio)
    ks = jax.random.split(key, 10)
    rnd = lambda k, shape: 0.02 * jax.random.normal(k, shape, jnp.float32)
    return dict(
        ln1_w=1.0 + rnd(ks[0], (D,)), ln1_b=rnd(ks[1], (D,)),
        ln2_w=1.0 + rnd(ks[2], (D,)), ln2_b=rnd(ks[3], (D,)),
        w_in=rnd(ks[4], (3 * D, D)), b_in=rnd(ks[5], (3 * D,)),
        w_out=rnd(ks[6], (D, D)), b_out=rnd(ks[7], (D,)),
        w_fc=rnd(ks[8], (I, D)), b_fc=jnp.full((I,), 0.01, jnp.float32),
        w_proj=rnd(ks[9], (D, I)), b_proj=jnp.full((D,), -0.01, jnp.float32),
    )


def reference_block(x, p, *, num_heads, eps=1e-5):
    S, B, D = x.shape
    hd = D // num_heads

    def ln(v, w, b):
        mu = v.mean(-1, keepdims=True)
        var = ((v - mu) ** 2).mean(-1, keepdims=True)
        return (v - mu) / jnp.sqrt(var + eps) * w + b

    h = ln(x, p["ln1_w"], p["ln1_b"])
    qkv = jnp.einsum("sbd,ed->sbe", h, p["w_in"]) + p["b_in"]
    qkv = qkv.reshape(S, B, num_heads, 3 * hd)
    q, k, v = qkv[..., :hd], qkv[..., hd:2 * hd], qkv[..., 2 * hd:]
    merge = lambda u: u.reshape(S, B * num_heads, hd).transpose(1, 0, 2)
    q, k, v = merge(q), merge(k), merge(v)
    s = jnp.einsum("nqh,nkh->nqk", q / math.sqrt(hd), k)
    a = jax.nn.softmax(s, axis=-1)
    ctx = jnp.einsum("nqk,nkh->nqh", a, v)
    ctx = ctx.reshape(B, num_heads, S, hd).transpose(2, 0, 1, 3).reshape(S, B, D)
    x1 = x + jnp.einsum("sbd,ed->sbe", ctx, p["w_out"]) + p["b_out"]
    h2 = ln(x1, p["ln2_w"], p["ln2_b"])
    ff = jnp.einsum("sbd,id->sbi", h2, p["w_fc"]) + p["b_fc"]
    ff = 0.5 * ff * (1.0 + jax.lax.erf(ff / math.sqrt(2.0)))
    mlp = jnp.einsum("sbi,di->sbd", ff, p["w_proj"]) + p["b_proj"]
    return x1 + mlp


if __name__ == "__main__":
    # Small lane-friendly demo shapes that still exercise every grid axis:
    # 2 seq tiles, 2 kv tiles, 2 MLP I tiles, 8 (batch*head) flash programs.
    S, B, D, NH = 16, 2, 64, 4
    key = jax.random.PRNGKey(0)
    kx, kp = jax.random.split(key)
    x = jax.random.normal(kx, (S, B, D), jnp.float32)      # (seq, batch, hidden)
    params = make_params(kp, D, NH, mlp_ratio=4.0)

    out = visual_attention_block(x, params, num_heads=NH,
                                 seq_tile=8, kv_tile=8, i_tile=128)
    jax.block_until_ready(out)

    assert out.shape == (S, B, D) and out.dtype == jnp.float32
    assert bool(jnp.all(jnp.isfinite(out)))
    ref = reference_block(x, params, num_heads=NH)
    err = float(jnp.max(jnp.abs(out - ref)))
    assert err < 2e-2, f"max |kernel - reference| = {err}"
    print("KERNEL_OK")
</pallas_src>

<mosaic_0001>
module attributes {stable_mosaic.version = 11 : i64} {
  func.func @_ln1_qkv_kernel(%arg0: i32, %arg1: memref<8x2x64xf32, #tpu.memory_space<vmem>>, %arg2: memref<1x64xf32, #tpu.memory_space<vmem>>, %arg3: memref<1x64xf32, #tpu.memory_space<vmem>>, %arg4: memref<64x192xbf16, #tpu.memory_space<vmem>>, %arg5: memref<1x192xf32, #tpu.memory_space<vmem>>, %arg6: memref<8x8x16xbf16, #tpu.memory_space<vmem>>, %arg7: memref<8x8x16xbf16, #tpu.memory_space<vmem>>, %arg8: memref<8x8x16xbf16, #tpu.memory_space<vmem>>) attributes {dimension_semantics = [#tpu.dimension_semantics<parallel>], iteration_bounds = array<i64: 2>, scalar_prefetch = 0 : i64, scratch_operands = 0 : i64, tpu.core_type = #tpu.core_type<tc>, window_params = [{transform_indices = @transform_0, window_bounds = array<i64: 8, 2, 64>}, {pipeline_mode = #tpu.pipeline_mode<synchronous>, transform_indices = @transform_1, window_bounds = array<i64: 1, 64>}, {pipeline_mode = #tpu.pipeline_mode<synchronous>, transform_indices = @transform_2, window_bounds = array<i64: 1, 64>}, {pipeline_mode = #tpu.pipeline_mode<synchronous>, transform_indices = @transform_3, window_bounds = array<i64: 64, 192>}, {pipeline_mode = #tpu.pipeline_mode<synchronous>, transform_indices = @transform_4, window_bounds = array<i64: 1, 192>}, {transform_indices = @transform_5, window_bounds = array<i64: 8, 8, 16>}, {transform_indices = @transform_6, window_bounds = array<i64: 8, 8, 16>}, {transform_indices = @transform_7, window_bounds = array<i64: 8, 8, 16>}]} {
    %c0 = arith.constant 0 : index
    %c0_0 = arith.constant 0 : index
    %c0_1 = arith.constant 0 : index
    %0 = vector.load %arg1[%c0, %c0_0, %c0_1] : memref<8x2x64xf32, #tpu.memory_space<vmem>>, vector<8x2x64xf32>
    %c0_2 = arith.constant 0 : index
    %c0_3 = arith.constant 0 : index
    %1 = vector.load %arg2[%c0_2, %c0_3] : memref<1x64xf32, #tpu.memory_space<vmem>>, vector<1x64xf32>
    %2 = vector.shape_cast %1 : vector<1x64xf32> to vector<64xf32>
    %c0_4 = arith.constant 0 : index
    %c0_5 = arith.constant 0 : index
    %3 = vector.load %arg3[%c0_4, %c0_5] : memref<1x64xf32, #tpu.memory_space<vmem>>, vector<1x64xf32>
    %4 = vector.shape_cast %3 : vector<1x64xf32> to vector<64xf32>
    %cst = arith.constant dense<0.000000e+00> : vector<8x2xf32>
    %5 = vector.multi_reduction <add>, %0, %cst [2] : vector<8x2x64xf32> to vector<8x2xf32>
    %6 = vector.shape_cast %5 : vector<8x2xf32> to vector<8x2x1xf32>
    %cst_6 = arith.constant 6.400000e+01 : f32
    %7 = vector.broadcast %cst_6 : f32 to vector<8x2x1xf32>
    %8 = arith.divf %6, %7 : vector<8x2x1xf32>
    %9 = vector.broadcast %8 : vector<8x2x1xf32> to vector<8x2x64xf32>
    %10 = arith.subf %0, %9 : vector<8x2x64xf32>
    %11 = arith.mulf %10, %10 : vector<8x2x64xf32>
    %cst_7 = arith.constant dense<0.000000e+00> : vector<8x2xf32>
    %12 = vector.multi_reduction <add>, %11, %cst_7 [2] : vector<8x2x64xf32> to vector<8x2xf32>
    %13 = vector.shape_cast %12 : vector<8x2xf32> to vector<8x2x1xf32>
    %cst_8 = arith.constant 6.400000e+01 : f32
    %14 = vector.broadcast %cst_8 : f32 to vector<8x2x1xf32>
    %15 = arith.divf %13, %14 : vector<8x2x1xf32>
    %16 = vector.broadcast %8 : vector<8x2x1xf32> to vector<8x2x64xf32>
    %17 = arith.subf %0, %16 : vector<8x2x64xf32>
    %cst_9 = arith.constant 9.99999974E-6 : f32
    %18 = vector.broadcast %cst_9 : f32 to vector<8x2x1xf32>
    %19 = arith.addf %15, %18 : vector<8x2x1xf32>
    %20 = math.rsqrt %19 : vector<8x2x1xf32>
    %21 = vector.broadcast %20 : vector<8x2x1xf32> to vector<8x2x64xf32>
    %22 = arith.mulf %17, %21 : vector<8x2x64xf32>
    %23 = vector.shape_cast %2 : vector<64xf32> to vector<1x1x64xf32>
    %24 = vector.broadcast %23 : vector<1x1x64xf32> to vector<8x2x64xf32>
    %25 = arith.mulf %22, %24 : vector<8x2x64xf32>
    %26 = vector.shape_cast %4 : vector<64xf32> to vector<1x1x64xf32>
    %27 = vector.broadcast %26 : vector<1x1x64xf32> to vector<8x2x64xf32>
    %28 = arith.addf %25, %27 : vector<8x2x64xf32>
    %29 = vector.shape_cast %28 : vector<8x2x64xf32> to vector<16x64xf32>
    %30 = arith.truncf %29 : vector<16x64xf32> to vector<16x64xbf16>
    %c0_10 = arith.constant 0 : index
    %c0_11 = arith.constant 0 : index
    %31 = vector.load %arg4[%c0_10, %c0_11] : memref<64x192xbf16, #tpu.memory_space<vmem>>, vector<64x192xbf16>
    %cst_12 = arith.constant dense<0.000000e+00> : vector<16x192xf32>
    %32 = tpu.matmul %30, %31, %cst_12 {dimension_numbers = #tpu.dot_dimension_numbers<[1], [0], [0], [1], [0, 0, 1, 1], [], []>} : vector<16x64xbf16>, vector<64x192xbf16>, vector<16x192xf32> -> vector<16x192xf32>
    %c0_13 = arith.constant 0 : index
    %c0_14 = arith.constant 0 : index
    %33 = vector.load %arg5[%c0_13, %c0_14] : memref<1x192xf32, #tpu.memory_space<vmem>>, vector<1x192xf32>
    %34 = vector.shape_cast %33 : vector<1x192xf32> to vector<192xf32>
    %35 = vector.shape_cast %34 : vector<192xf32> to vector<1x192xf32>
    %36 = vector.broadcast %35 : vector<1x192xf32> to vector<16x192xf32>
    %37 = arith.addf %32, %36 : vector<16x192xf32>
    %38 = vector.extract_strided_slice %37 {offsets = [0, 0], sizes = [16, 64], strides = [1, 1]} : vector<16x192xf32> to vector<16x64xf32>
    %39 = vector.shape_cast %38 : vector<16x64xf32> to vector<8x2x4x16xf32>
    %40 = tpu.transpose %39, [1, 2, 0, 3] : vector<8x2x4x16xf32> -> vector<2x4x8x16xf32>
    %41 = vector.shape_cast %40 : vector<2x4x8x16xf32> to vector<8x8x16xf32>
    %42 = arith.truncf %41 : vector<8x8x16xf32> to vector<8x8x16xbf16>
    %c0_15 = arith.constant 0 : index
    %c0_16 = arith.constant 0 : index
    %c0_17 = arith.constant 0 : index
    %43 = vector.load %arg6[%c0_15, %c0_16, %c0_17] : memref<8x8x16xbf16, #tpu.memory_space<vmem>>, vector<8x8x16xbf16>
    tpu.vector_store %arg6[%c0_15, %c0_16, %c0_17], %42 {strides = array<i32>} : memref<8x8x16xbf16, #tpu.memory_space<vmem>>, vector<8x8x16xbf16>,
    %44 = vector.extract_strided_slice %37 {offsets = [0, 64], sizes = [16, 64], strides = [1, 1]} : vector<16x192xf32> to vector<16x64xf32>
    %45 = vector.shape_cast %44 : vector<16x64xf32> to vector<8x2x4x16xf32>
    %46 = tpu.transpose %45, [1, 2, 0, 3] : vector<8x2x4x16xf32> -> vector<2x4x8x16xf32>
    %47 = vector.shape_cast %46 : vector<2x4x8x16xf32> to vector<8x8x16xf32>
    %48 = arith.truncf %47 : vector<8x8x16xf32> to vector<8x8x16xbf16>
    %c0_18 = arith.constant 0 : index
    %c0_19 = arith.constant 0 : index
    %c0_20 = arith.constant 0 : index
    %49 = vector.load %arg7[%c0_18, %c0_19, %c0_20] : memref<8x8x16xbf16, #tpu.memory_space<vmem>>, vector<8x8x16xbf16>
    tpu.vector_store %arg7[%c0_18, %c0_19, %c0_20], %48 {strides = array<i32>} : memref<8x8x16xbf16, #tpu.memory_space<vmem>>, vector<8x8x16xbf16>,
    %50 = vector.extract_strided_slice %37 {offsets = [0, 128], sizes = [16, 64], strides = [1, 1]} : vector<16x192xf32> to vector<16x64xf32>
    %51 = vector.shape_cast %50 : vector<16x64xf32> to vector<8x2x4x16xf32>
    %52 = tpu.transpose %51, [1, 2, 0, 3] : vector<8x2x4x16xf32> -> vector<2x4x8x16xf32>
    %53 = vector.shape_cast %52 : vector<2x4x8x16xf32> to vector<8x8x16xf32>
    %54 = arith.truncf %53 : vector<8x8x16xf32> to vector<8x8x16xbf16>
    %c0_21 = arith.constant 0 : index
    %c0_22 = arith.constant 0 : index
    %c0_23 = arith.constant 0 : index
    %55 = vector.load %arg8[%c0_21, %c0_22, %c0_23] : memref<8x8x16xbf16, #tpu.memory_space<vmem>>, vector<8x8x16xbf16>
    tpu.vector_store %arg8[%c0_21, %c0_22, %c0_23], %54 {strides = array<i32>} : memref<8x8x16xbf16, #tpu.memory_space<vmem>>, vector<8x8x16xbf16>,
    return
  }
  func.func @transform_0(%arg0: i32) -> (i32, i32, i32) {
    %c0_i32 = arith.constant 0 : i32
    %c0_i32_0 = arith.constant 0 : i32
    %c0_i32_1 = arith.constant 0 : i32
    return %arg0, %c0_i32, %c0_i32_0 : i32, i32, i32
  }
  func.func @transform_1(%arg0: i32) -> (i32, i32) {
    %c0_i32 = arith.constant 0 : i32
    %c0_i32_0 = arith.constant 0 : i32
    %c0_i32_1 = arith.constant 0 : i32
    return %c0_i32, %c0_i32_0 : i32, i32
  }
  func.func @transform_2(%arg0: i32) -> (i32, i32) {
    %c0_i32 = arith.constant 0 : i32
    %c0_i32_0 = arith.constant 0 : i32
    %c0_i32_1 = arith.constant 0 : i32
    return %c0_i32, %c0_i32_0 : i32, i32
  }
  func.func @transform_3(%arg0: i32) -> (i32, i32) {
    %c0_i32 = arith.constant 0 : i32
    %c0_i32_0 = arith.constant 0 : i32
    %c0_i32_1 = arith.constant 0 : i32
    return %c0_i32, %c0_i32_0 : i32, i32
  }
  func.func @transform_4(%arg0: i32) -> (i32, i32) {
    %c0_i32 = arith.constant 0 : i32
    %c0_i32_0 = arith.constant 0 : i32
    %c0_i32_1 = arith.constant 0 : i32
    return %c0_i32, %c0_i32_0 : i32, i32
  }
  func.func @transform_5(%arg0: i32) -> (i32, i32, i32) {
    %c0_i32 = arith.constant 0 : i32
    %c0_i32_0 = arith.constant 0 : i32
    %c0_i32_1 = arith.constant 0 : i32
    return %c0_i32, %arg0, %c0_i32_0 : i32, i32, i32
  }
  func.func @transform_6(%arg0: i32) -> (i32, i32, i32) {
    %c0_i32 = arith.constant 0 : i32
    %c0_i32_0 = arith.constant 0 : i32
    %c0_i32_1 = arith.constant 0 : i32
    return %c0_i32, %arg0, %c0_i32_0 : i32, i32, i32
  }
  func.func @transform_7(%arg0: i32) -> (i32, i32, i32) {
    %c0_i32 = arith.constant 0 : i32
    %c0_i32_0 = arith.constant 0 : i32
    %c0_i32_1 = arith.constant 0 : i32
    return %c0_i32, %arg0, %c0_i32_0 : i32, i32, i32
  }
}

</mosaic_0001>

<llo_original>
// kernel: tpu_custom_call.1
$region0: #{tpu_custom_call.1}
  #allocation0 [shape = 'u32[]', space=smem, size = 0x4, offset = 0x4, fixed_abs, tag = 'smem constant byte address 0x4 - core index']
  #allocation1 [shape = 'u32[144,128]{1,0:T(1,128)}', space=vmem, size = 0x12000, scoped, tag = 'internal scratch']
  %s0 = inlined_call_operand.hbm [shape: f32[16,2,64], index: 0, kind: input, shape index: {}]
  %s1 = inlined_call_operand.vmem [shape: f32[1,64], index: 1, kind: input, shape index: {}]
  %s2 = inlined_call_operand.vmem [shape: f32[1,64], index: 2, kind: input, shape index: {}]
  %s3 = inlined_call_operand.hbm [shape: bf16[64,192], index: 3, kind: input, shape index: {}]
  %s4 = inlined_call_operand.vmem [shape: f32[1,192], index: 4, kind: input, shape index: {}]
  %s5 = inlined_call_operand.hbm [shape: bf16[8,16,16], index: 5, kind: output, shape index: {0}]
  %s6 = inlined_call_operand.hbm [shape: bf16[8,16,16], index: 6, kind: output, shape index: {1}]
  %s7 = inlined_call_operand.hbm [shape: bf16[8,16,16], index: 7, kind: output, shape index: {2}]
  %8 = xla_tuple %s5, %s6, %s7
  %s9 = sld [smem:[#allocation0]]
  $region77: #{tpu_custom_call.1} parent=0
    _
  %s11 = ssub.s32 1, %s9
  %s12 = scalar_select 0, %s11, %s9
  $region1: #{tpu_custom_call.1} parent=0
    #allocation2 [shape = 'u8[16384]{0}', space=vmem, size = 0x4000, scoped, tag = 'input window, operand 0']
    #allocation3 [shape = 's32[2]{0}', space=sflag, size = 0x8, scoped, tag = 'scoped memory for tpu_custom_call.1']
    #allocation4 [shape = 's32[2]{0}', space=sflag, size = 0x8, scoped, tag = 'scoped memory for tpu_custom_call.1']
    #allocation5 [shape = 'u8[32768]{0}', space=vmem, size = 0x8000, scoped, tag = 'input window, operand 3, single buffered']
    #allocation6 [shape = 's32[1]{0}', space=sflag, size = 0x4, scoped, tag = 'scoped memory for tpu_custom_call.1']
    #allocation7 [shape = 'u8[32768]{0}', space=vmem, size = 0x8000, scoped, tag = 'output window, operand 0']
    #allocation8 [shape = 'u8[32768]{0}', space=vmem, size = 0x8000, scoped, tag = 'output window, operand 1']
    #allocation9 [shape = 's32[2]{0}', space=sflag, size = 0x8, scoped, tag = 'scoped memory for tpu_custom_call.1']
    #allocation10 [shape = 'u8[32768]{0}', space=vmem, size = 0x8000, scoped, tag = 'output window, operand 2']
    %13 = vsyncpa [#allocation3], 0
    %s14 = scalar_lea.sflag [#allocation3], 1
    %15 = vsyncpa %s14, 0
    %16 = vsyncpa [#allocation6], 0
    %17 = vsyncpa [#allocation4], 0
    %s18 = scalar_lea.sflag [#allocation4], 1
    %19 = vsyncpa %s18, 0
    %20 = vsyncpa [#allocation9], 0
    %s21 = scalar_lea.sflag [#allocation9], 1
    %22 = vsyncpa %s21, 0
    loop: start=0, step=1, limit=4
    $region2: #{tpu_custom_call.1} parent=1 // loop_pre_header
      _
    $region3: #{tpu_custom_call.1} parent=1 // loop_header
      %s24 = sphi 0, %s28
      %p25 = scmp.ge.s32.totalorder %s24, 4
      %s34 = sphi 0, %s36
      %s37 = sphi 0, %s34
      %s38 = sphi 0, %s37
      %s54 = sphi 0, %s38
      %s58 = sphi 0, %s58
      %s60 = sphi 0, %s58
      %s61 = sphi 0, %s60
      %s75 = sphi 0, %s61
      %s79 = sphi 0, %s79
      %s81 = sphi 0, %s79
      %s82 = sphi 0, %s81
      %s96 = sphi 0, %s82
      %s100 = sphi 0, %s100
      %s102 = sphi 0, %s100
      %s103 = sphi 0, %s102
      %s117 = sphi 0, %s103
      %s121 = sphi 0, %s121
      %s123 = sphi 0, %s121
      %s124 = sphi 0, %s123
      %s138 = sphi 0, %s124
      %s144 = sphi 0, %s146
      %s147 = sphi 0, %s144
      %s148 = sphi 0, %s147
      %s164 = sphi 0, %s148
      %s170 = sphi 0, %s172
      %s173 = sphi 0, %s170
      %s174 = sphi 0, %s173
      %s190 = sphi 0, %s174
      %s196 = sphi 0, %s198
      %s199 = sphi 0, %s196
      %s200 = sphi 0, %s199
      %s216 = sphi 0, %s200
    $region4: #{tpu_custom_call.1} parent=1 // loop_header_branch
      %27 = sbr.rel (%p25) target = $region8
    $region5: #{tpu_custom_call.1} parent=1 // loop_body
      %s29 = ssub.s32 %s24, 1
      %s30 = ssub.s32 %s24, 2
      %s31 = sadd.s32 %s24, 1
      %s32 = ssub.s32 %s24, %s31
      %p33 = scmp.eq.s32.totalorder %s32, 0
      %s35 = sadd.s32 %s34, 1
      %s36 = scalar_select %p33, %s34, %s35
      %p39 = pneg %p33
      %p40 = scmp.eq.s32.totalorder %s24, 1
      %p41 = por %p39, %p40
      %p42 = scmp.ne.s32.totalorder %s34, %s37
      %p43 = scmp.eq.s32.totalorder %s24, 0
      %p44 = por %p42, %p43
      %p45 = scmp.ne.s32.totalorder %s34, %s37
      %p46 = scmp.eq.s32.totalorder %s29, 1
      %p47 = por %p45, %p46
      %p48 = scmp.ne.s32.totalorder %s37, %s38
      %p49 = scmp.eq.s32.totalorder %s29, 0
      %p50 = por %p48, %p49
      %p51 = scmp.ne.s32.totalorder %s37, %s38
      %p52 = scmp.eq.s32.totalorder %s30, 1
      %p53 = por %p51, %p52
      %p55 = scmp.ne.s32.totalorder %s38, %s54
      %p56 = scmp.eq.s32.totalorder %s30, 0
      %p57 = por %p55, %p56
      %s59 = sadd.s32 %s58, 1
      %p62 = scmp.eq.s32.totalorder %s24, 1
      %p63 = scmp.ne.s32.totalorder %s58, %s60
      %p64 = scmp.eq.s32.totalorder %s24, 0
      %p65 = por %p63, %p64
      %p66 = scmp.ne.s32.totalorder %s58, %s60
      %p67 = scmp.eq.s32.totalorder %s29, 1
      %p68 = por %p66, %p67
      %p69 = scmp.ne.s32.totalorder %s60, %s61
      %p70 = scmp.eq.s32.totalorder %s29, 0
      %p71 = por %p69, %p70
      %p72 = scmp.ne.s32.totalorder %s60, %s61
      %p73 = scmp.eq.s32.totalorder %s30, 1
      %p74 = por %p72, %p73
      %p76 = scmp.ne.s32.totalorder %s61, %s75
      %p77 = scmp.eq.s32.totalorder %s30, 0
      %p78 = por %p76, %p77
      %s80 = sadd.s32 %s79, 1
      %p83 = scmp.eq.s32.totalorder %s24, 1
      %p84 = scmp.ne.s32.totalorder %s79, %s81
      %p85 = scmp.eq.s32.totalorder %s24, 0
      %p86 = por %p84, %p85
      %p87 = scmp.ne.s32.totalorder %s79, %s81
      %p88 = scmp.eq.s32.totalorder %s29, 1
      %p89 = por %p87, %p88
      %p90 = scmp.ne.s32.totalorder %s81, %s82
      %p91 = scmp.eq.s32.totalorder %s29, 0
      %p92 = por %p90, %p91
      %p93 = scmp.ne.s32.totalorder %s81, %s82
      %p94 = scmp.eq.s32.totalorder %s30, 1
      %p95 = por %p93, %p94
      %p97 = scmp.ne.s32.totalorder %s82, %s96
      %p98 = scmp.eq.s32.totalorder %s30, 0
      %p99 = por %p97, %p98
      %s101 = sadd.s32 %s100, 1
      %p104 = scmp.eq.s32.totalorder %s24, 1
      %p105 = scmp.ne.s32.totalorder %s100, %s102
      %p106 = scmp.eq.s32.totalorder %s24, 0
      %p107 = por %p105, %p106
      %p108 = scmp.ne.s32.totalorder %s100, %s102
      %p109 = scmp.eq.s32.totalorder %s29, 1
      %p110 = por %p108, %p109
      %p111 = scmp.ne.s32.totalorder %s102, %s103
      %p112 = scmp.eq.s32.totalorder %s29, 0
      %p113 = por %p111, %p112
      %p114 = scmp.ne.s32.totalorder %s102, %s103
      %p115 = scmp.eq.s32.totalorder %s30, 1
      %p116 = por %p114, %p115
      %p118 = scmp.ne.s32.totalorder %s103, %s117
      %p119 = scmp.eq.s32.totalorder %s30, 0
      %p120 = por %p118, %p119
      %s122 = sadd.s32 %s121, 1
      %p125 = scmp.eq.s32.totalorder %s24, 1
      %p126 = scmp.ne.s32.totalorder %s121, %s123
      %p127 = scmp.eq.s32.totalorder %s24, 0
      %p128 = por %p126, %p127
      %p129 = scmp.ne.s32.totalorder %s121, %s123
      %p130 = scmp.eq.s32.totalorder %s29, 1
      %p131 = por %p129, %p130
      %p132 = scmp.ne.s32.totalorder %s123, %s124
      %p133 = scmp.eq.s32.totalorder %s29, 0
      %p134 = por %p132, %p133
      %p135 = scmp.ne.s32.totalorder %s123, %s124
      %p136 = scmp.eq.s32.totalorder %s30, 1
      %p137 = por %p135, %p136
      %p139 = scmp.ne.s32.totalorder %s124, %s138
      %p140 = scmp.eq.s32.totalorder %s30, 0
      %p141 = por %p139, %p140
      %s142 = ssub.s32 %s24, %s31
      %p143 = scmp.eq.s32.totalorder %s142, 0
      %s145 = sadd.s32 %s144, 1
      %s146 = scalar_select %p143, %s144, %s145
      %p149 = pneg %p143
      %p150 = scmp.eq.s32.totalorder %s24, 1
      %p151 = por %p149, %p150
      %p152 = scmp.ne.s32.totalorder %s144, %s147
      %p153 = scmp.eq.s32.totalorder %s24, 0
      %p154 = por %p152, %p153
      %p155 = scmp.ne.s32.totalorder %s144, %s147
      %p156 = scmp.eq.s32.totalorder %s29, 1
      %p157 = por %p155, %p156
      %p158 = scmp.ne.s32.totalorder %s147, %s148
      %p159 = scmp.eq.s32.totalorder %s29, 0
      %p160 = por %p158, %p159
      %p161 = scmp.ne.s32.totalorder %s147, %s148
      %p162 = scmp.eq.s32.totalorder %s30, 1
      %p163 = por %p161, %p162
      %p165 = scmp.ne.s32.totalorder %s148, %s164
      %p166 = scmp.eq.s32.totalorder %s30, 0
      %p167 = por %p165, %p166
      %s168 = ssub.s32 %s24, %s31
      %p169 = scmp.eq.s32.totalorder %s168, 0
      %s171 = sadd.s32 %s170, 1
      %s172 = scalar_select %p169, %s170, %s171
      %p175 = pneg %p169
      %p176 = scmp.eq.s32.totalorder %s24, 1
      %p177 = por %p175, %p176
      %p178 = scmp.ne.s32.totalorder %s170, %s173
      %p179 = scmp.eq.s32.totalorder %s24, 0
      %p180 = por %p178, %p179
      %p181 = scmp.ne.s32.totalorder %s170, %s173
      %p182 = scmp.eq.s32.totalorder %s29, 1
      %p183 = por %p181, %p182
      %p184 = scmp.ne.s32.totalorder %s173, %s174
      %p185 = scmp.eq.s32.totalorder %s29, 0
      %p186 = por %p184, %p185
      %p187 = scmp.ne.s32.totalorder %s173, %s174
      %p188 = scmp.eq.s32.totalorder %s30, 1
      %p189 = por %p187, %p188
      %p191 = scmp.ne.s32.totalorder %s174, %s190
      %p192 = scmp.eq.s32.totalorder %s30, 0
      %p193 = por %p191, %p192
      %s194 = ssub.s32 %s24, %s31
      %p195 = scmp.eq.s32.totalorder %s194, 0
      %s197 = sadd.s32 %s196, 1
      %s198 = scalar_select %p195, %s196, %s197
      %p201 = pneg %p195
      %p202 = scmp.eq.s32.totalorder %s24, 1
      %p203 = por %p201, %p202
      %p204 = scmp.ne.s32.totalorder %s196, %s199
      %p205 = scmp.eq.s32.totalorder %s24, 0
      %p206 = por %p204, %p205
      %p207 = scmp.ne.s32.totalorder %s196, %s199
      %p208 = scmp.eq.s32.totalorder %s29, 1
      %p209 = por %p207, %p208
      %p210 = scmp.ne.s32.totalorder %s199, %s200
      %p211 = scmp.eq.s32.totalorder %s29, 0
      %p212 = por %p210, %p211
      %p213 = scmp.ne.s32.totalorder %s199, %s200
      %p214 = scmp.eq.s32.totalorder %s30, 1
      %p215 = por %p213, %p214
      %p217 = scmp.ne.s32.totalorder %s200, %s216
      %p218 = scmp.eq.s32.totalorder %s30, 0
      %p219 = por %p217, %p218
      %p220 = scmp.le.s32.totalorder 1, %s24
      %p221 = scmp.lt.s32.totalorder %s24, 3
      %p222 = pnand %p220, %p221
      %p223 = pneg %p222
      // Predicated region
      $region9: #{tpu_custom_call.1} parent=5 // pred_check
        _
      $region10: #{tpu_custom_call.1} parent=5 // pred_check_branch
        %225 = sbr.rel (%p222) target = $region12
      $region11: #{tpu_custom_call.1} parent=5 // pred_region
        %s226 = ssub.s32 %s24, 1
        // Predicated region
        $region13: #{tpu_custom_call.1} parent=11 // pred_check
          %p227 = pneg %p71
        $region14: #{tpu_custom_call.1} parent=11 // pred_check_branch
          %229 = sbr.rel (%p227) target = $region16
        $region15: #{tpu_custom_call.1} parent=11 // pred_region
          _
        $region16: #{tpu_custom_call.1} parent=11 // pred_fallthru
          _
        // Predicated region
        $region17: #{tpu_custom_call.1} parent=11 // pred_check
          %p230 = pneg %p92
        $region18: #{tpu_custom_call.1} parent=11 // pred_check_branch
          %232 = sbr.rel (%p230) target = $region20
        $region19: #{tpu_custom_call.1} parent=11 // pred_region
          _
        $region20: #{tpu_custom_call.1} parent=11 // pred_fallthru
          _
        // Predicated region
        $region21: #{tpu_custom_call.1} parent=11 // pred_check
          %p233 = pneg %p113
        $region22: #{tpu_custom_call.1} parent=11 // pred_check_branch
          %235 = sbr.rel (%p233) target = $region24
        $region23: #{tpu_custom_call.1} parent=11 // pred_region
          %s237 = ssub.s32 1024, 1024
          %238 = vsyncadd [#allocation6], %s237
          %s239 = sshll.u32 [#allocation5], 4
          %s240 = int_to_ptr.vmem [resolvable:$true] %s239
          %245 = dma.hbm_to_vmem [thread:$0]  %s3, 1024, %s240, [#allocation6], 128, 128, 8
        $region24: #{tpu_custom_call.1} parent=11 // pred_fallthru
          _
        // Predicated region
        $region25: #{tpu_custom_call.1} parent=11 // pred_check
          %p246 = pneg %p134
        $region26: #{tpu_custom_call.1} parent=11 // pred_check_branch
          %248 = sbr.rel (%p246) target = $region28
        $region27: #{tpu_custom_call.1} parent=11 // pred_region
          _
        $region28: #{tpu_custom_call.1} parent=11 // pred_fallthru
          _
      $region12: #{tpu_custom_call.1} parent=5 // pred_fallthru
        _
      %p249 = scmp.lt.s32.totalorder %s24, 2
      // Predicated region
      $region29: #{tpu_custom_call.1} parent=5 // pred_check
        %p250 = pneg %p249
      $region30: #{tpu_custom_call.1} parent=5 // pred_check_branch
        %252 = sbr.rel (%p250) target = $region32
      $region31: #{tpu_custom_call.1} parent=5 // pred_region
        // Predicated region
        $region33: #{tpu_custom_call.1} parent=31 // pred_check
          %p253 = pneg %p44
        $region34: #{tpu_custom_call.1} parent=31 // pred_check_branch
          %255 = sbr.rel (%p253) target = $region36
        $region35: #{tpu_custom_call.1} parent=31 // pred_region
          %s256 = sand.u32 %s34, 1
          %s257 = scalar_lea.sflag [#allocation3], %s256
          %s258 = sand.u32 %s34, 1
          %s259 = smul.addr %s258, 16
          %s260 = scalar_lea.vmem [#allocation2], %s259
          %s261 = smul.u32 8, %s24
          %s263 = ssub.s32 256, 256
          %264 = vsyncadd %s257, %s263
          %s265 = smul.addr %s261, 32
          %s266 = scalar_lea.hbm %s0, %s265
          %s267 = sshll.u32 %s260, 4
          %s268 = int_to_ptr.vmem [resolvable:$true] %s267
          %273 = dma.hbm_to_vmem [thread:$0]  %s266, 256, %s268, %s257, 32, 32, 2
        $region36: #{tpu_custom_call.1} parent=31 // pred_fallthru
          _
      $region32: #{tpu_custom_call.1} parent=5 // pred_fallthru
        _
      %p274 = scmp.le.s32.totalorder 1, %s24
      %p275 = scmp.lt.s32.totalorder %s24, 3
      %p276 = pnand %p274, %p275
      %p277 = pneg %p276
      // Predicated region
      $region37: #{tpu_custom_call.1} parent=5 // pred_check
        _
      $region38: #{tpu_custom_call.1} parent=5 // pred_check_branch
        %279 = sbr.rel (%p276) target = $region40
      $region39: #{tpu_custom_call.1} parent=5 // pred_region
        %s280 = ssub.s32 %s24, 1
        %s281 = sand.u32 %s37, 1
        %s282 = scalar_lea.sflag [#allocation3], %s281
        %s283 = sand.u32 %s37, 1
        %s284 = smul.addr %s283, 16
        %s285 = scalar_lea.vmem [#allocation2], %s284
        // Predicated region
        $region41: #{tpu_custom_call.1} parent=39 // pred_check
          %p286 = pneg %p50
        $region42: #{tpu_custom_call.1} parent=39 // pred_check_branch
          %288 = sbr.rel (%p286) target = $region44
        $region43: #{tpu_custom_call.1} parent=39 // pred_region
          %289 = dma.done %s282, 256
        $region44: #{tpu_custom_call.1} parent=39 // pred_fallthru
          _
        // Predicated region
        $region45: #{tpu_custom_call.1} parent=39 // pred_check
          %p290 = pneg %p113
        $region46: #{tpu_custom_call.1} parent=39 // pred_check_branch
          %292 = sbr.rel (%p290) target = $region48
        $region47: #{tpu_custom_call.1} parent=39 // pred_region
          %293 = dma.done [#allocation6], 1024
        $region48: #{tpu_custom_call.1} parent=39 // pred_fallthru
          _
        %s294 = sand.u32 %s37, 1
        %s295 = scalar_lea.sflag [#allocation3], %s294
        %s296 = sand.u32 %s37, 1
        %s297 = smul.addr %s296, 16
        %s298 = scalar_lea.vmem [#allocation2], %s297
        %p299 = pneg %p50
        %p300 = pneg %p47
        %p301 = pneg %p71
        %p302 = pneg %p68
        %p303 = pneg %p92
        %p304 = pneg %p89
        %p305 = pneg %p113
        %p306 = pneg %p110
        %p307 = pneg %p134
        %p308 = pneg %p131
        %p309 = pneg %p160
        %p310 = pneg %p157
        %s311 = sand.u32 %s147, 1
        %s312 = scalar_lea.sflag [#allocation4], %s311
        %s313 = sand.u32 %s147, 1
        %s314 = smul.addr %s313, 32
        %s315 = scalar_lea.vmem [#allocation7], %s314
        %p316 = pneg %p186
        %p317 = pneg %p183
        %s318 = sand.u32 %s29, 1
        %s319 = scalar_lea.sflag [#allocation9], %s318
        %s320 = sand.u32 %s173, 1
        %s321 = smul.addr %s320, 32
        %s322 = scalar_lea.vmem [#allocation8], %s321
        %p323 = pneg %p212
        %p324 = pneg %p209
        %s325 = sand.u32 %s29, 1
        %s326 = scalar_lea.sflag [#allocation9], %s325
        %s327 = sand.u32 %s199, 1
        %s328 = smul.addr %s327, 32
        %s329 = scalar_lea.vmem [#allocation10], %s328
        %s330 = smul.u32 8, %s29
        %v332 = vld [vmem:[%s285] sm:$0x3]
        %v333 = vld [vmem:[%s285 + $0x2] sm:$0x3]
        %v334 = vld [vmem:[%s285 + $0x4] sm:$0x3]
        %v335 = vld [vmem:[%s285 + $0x6] sm:$0x3]
        %v336 = vld [vmem:[%s285 + $0x8] sm:$0x3]
        %v337 = vld [vmem:[%s285 + $0xa] sm:$0x3]
        %v338 = vld [vmem:[%s285 + $0xc] sm:$0x3]
        %v339 = vld [vmem:[%s285 + $0xe] sm:$0x3]
        %v340 = vld [vmem:[%s1] sm:$0x1]
        %v341 = vld [vmem:[%s2] sm:$0x1]
        %vm342 = vcmask 517120
        %v343 = vsel %vm342, %v332, 0.0
        %344 = vadd.xlane.f32.xlu0 %v343
        %v345 = vpop.xlane.xlu0 %344
        %v346 = vsel %vm342, %v333, 0.0
        %347 = vadd.xlane.f32.xlu0 %v346
        %v348 = vpop.xlane.xlu0 %347
        %v349 = vsel %vm342, %v334, 0.0
        %350 = vadd.xlane.f32.xlu0 %v349
        %v351 = vpop.xlane.xlu0 %350
        %v352 = vsel %vm342, %v335, 0.0
        %353 = vadd.xlane.f32.xlu0 %v352
        %v354 = vpop.xlane.xlu0 %353
        %v355 = vsel %vm342, %v336, 0.0
        %356 = vadd.xlane.f32.xlu0 %v355
        %v357 = vpop.xlane.xlu0 %356
        %v358 = vsel %vm342, %v337, 0.0
        %359 = vadd.xlane.f32.xlu0 %v358
        %v360 = vpop.xlane.xlu0 %359
        %v361 = vsel %vm342, %v338, 0.0
        %362 = vadd.xlane.f32.xlu0 %v361
        %v363 = vpop.xlane.xlu0 %362
        %v364 = vsel %vm342, %v339, 0.0
        %365 = vadd.xlane.f32.xlu0 %v364
        %v366 = vpop.xlane.xlu0 %365
        %v367 = vrcp.pop 64.0
        %v368 = vmul.f32 %v345, %v367
        %v369 = vmul.f32 %v348, %v367
        %v370 = vmul.f32 %v351, %v367
        %v371 = vmul.f32 %v354, %v367
        %v372 = vmul.f32 %v357, %v367
        %v373 = vmul.f32 %v360, %v367
        %v374 = vmul.f32 %v363, %v367
        %v375 = vmul.f32 %v366, %v367
        %v376 = vsub.f32 %v332, %v368
        %v377 = vsub.f32 %v333, %v369
        %v378 = vsub.f32 %v334, %v370
        %v379 = vsub.f32 %v335, %v371
        %v380 = vsub.f32 %v336, %v372
        %v381 = vsub.f32 %v337, %v373
        %v382 = vsub.f32 %v338, %v374
        %v383 = vsub.f32 %v339, %v375
        %v384 = vmul.f32 %v376, %v376
        %v385 = vmul.f32 %v377, %v377
        %v386 = vmul.f32 %v378, %v378
        %v387 = vmul.f32 %v379, %v379
        %v388 = vmul.f32 %v380, %v380
        %v389 = vmul.f32 %v381, %v381
        %v390 = vmul.f32 %v382, %v382
        %v391 = vmul.f32 %v383, %v383
        %v392 = vsel %vm342, %v384, 0.0
        %393 = vadd.xlane.f32.xlu0 %v392
        %v394 = vpop.xlane.xlu0 %393
        %v395 = vsel %vm342, %v385, 0.0
        %396 = vadd.xlane.f32.xlu0 %v395
        %v397 = vpop.xlane.xlu0 %396
        %v398 = vsel %vm342, %v386, 0.0
        %399 = vadd.xlane.f32.xlu0 %v398
        %v400 = vpop.xlane.xlu0 %399
        %v401 = vsel %vm342, %v387, 0.0
        %402 = vadd.xlane.f32.xlu0 %v401
        %v403 = vpop.xlane.xlu0 %402
        %v404 = vsel %vm342, %v388, 0.0
        %405 = vadd.xlane.f32.xlu0 %v404
        %v406 = vpop.xlane.xlu0 %405
        %v407 = vsel %vm342, %v389, 0.0
        %408 = vadd.xlane.f32.xlu0 %v407
        %v409 = vpop.xlane.xlu0 %408
        %v410 = vsel %vm342, %v390, 0.0
        %411 = vadd.xlane.f32.xlu0 %v410
        %v412 = vpop.xlane.xlu0 %411
        %v413 = vsel %vm342, %v391, 0.0
        %414 = vadd.xlane.f32.xlu0 %v413
        %v415 = vpop.xlane.xlu0 %414
        %v416 = vmul.f32 %v394, %v367
        %v417 = vmul.f32 %v397, %v367
        %v418 = vmul.f32 %v400, %v367
        %v419 = vmul.f32 %v403, %v367
        %v420 = vmul.f32 %v406, %v367
        %v421 = vmul.f32 %v409, %v367
        %v422 = vmul.f32 %v412, %v367
        %v423 = vmul.f32 %v415, %v367
        %v424 = vadd.f32 %v416, 1e-05
        %v425 = vadd.f32 %v417, 1e-05
        %v426 = vadd.f32 %v418, 1e-05
        %v427 = vadd.f32 %v419, 1e-05
        %v428 = vadd.f32 %v420, 1e-05
        %v429 = vadd.f32 %v421, 1e-05
        %v430 = vadd.f32 %v422, 1e-05
        %v431 = vadd.f32 %v423, 1e-05
        %v432 = vrsqrt.pop %v424
        %v433 = vrsqrt.pop %v425
        %v434 = vrsqrt.pop %v426
        %v435 = vrsqrt.pop %v427
        %v436 = vrsqrt.pop %v428
        %v437 = vrsqrt.pop %v429
        %v438 = vrsqrt.pop %v430
        %v439 = vrsqrt.pop %v431
        %v440 = vmul.f32 %v376, %v432
        %v441 = vmul.f32 %v377, %v433
        %v442 = vmul.f32 %v378, %v434
        %v443 = vmul.f32 %v379, %v435
        %v444 = vmul.f32 %v380, %v436
        %v445 = vmul.f32 %v381, %v437
        %v446 = vmul.f32 %v382, %v438
        %v447 = vmul.f32 %v383, %v439
        %v449 = vlaneseq
        %v450 = vshrl.u32 %v449, 7
        %v451 = vsub.s32 0, %v450
        %v452 = vrot.slane %v340, %v451
        %v454 = vmul.f32 %v440, %v452
        %v455 = vmul.f32 %v441, %v452
        %v456 = vmul.f32 %v442, %v452
        %v457 = vmul.f32 %v443, %v452
        %v458 = vmul.f32 %v444, %v452
        %v459 = vmul.f32 %v445, %v452
        %v460 = vmul.f32 %v446, %v452
        %v461 = vmul.f32 %v447, %v452
        %v463 = vlaneseq
        %v464 = vshrl.u32 %v463, 7
        %v465 = vsub.s32 0, %v464
        %v466 = vrot.slane %v341, %v465
        %v468 = vadd.f32 %v454, %v466
        %v469 = vadd.f32 %v455, %v466
        %v470 = vadd.f32 %v456, %v466
        %v471 = vadd.f32 %v457, %v466
        %v472 = vadd.f32 %v458, %v466
        %v473 = vadd.f32 %v459, %v466
        %v474 = vadd.f32 %v460, %v466
        %v475 = vadd.f32 %v461, %v466
        %v484 = vcombine.low %v468, %v469
        %v485 = vcombine.low %v470, %v471
        %v487 = vunpack.c.l.s4 1983009808
        %v488 = vunpack.c.0.s8 %v487
        %v489 = vlaneseq
        %v490 = vshrl.u32 %v489, 7
        %v491 = vsub.s32 %v488, %v490
        %v492 = vrot.slane %v484, %v491
        %v494 = vunpack.c.l.s4 1983009808
        %v495 = vunpack.c.0.s8 %v494
        %v496 = vlaneseq
        %v497 = vshrl.u32 %v496, 7
        %v498 = vsub.s32 %v495, %v497
        %v499 = vrot.slane %v485, %v498
        %v500 = vcombine.low %v492, %v499
        %v501 = vcombine.low %v472, %v473
        %v502 = vcombine.low %v474, %v475
        %v504 = vunpack.c.l.s4 1983009808
        %v505 = vunpack.c.0.s8 %v504
        %v506 = vlaneseq
        %v507 = vshrl.u32 %v506, 7
        %v508 = vsub.s32 %v505, %v507
        %v509 = vrot.slane %v501, %v508
        %v511 = vunpack.c.l.s4 1983009808
        %v512 = vunpack.c.0.s8 %v511
        %v513 = vlaneseq
        %v514 = vshrl.u32 %v513, 7
        %v515 = vsub.s32 %v512, %v514
        %v516 = vrot.slane %v502, %v515
        %v517 = vcombine.low %v509, %v516
        %v520 = vpack.c.bf16 %v517, %v500
        %v521 = vld [vmem:[#allocation5] sm:$0xff]
        %v522 = vld [vmem:[#allocation5 + $0x8] sm:$0xff]
        %v523 = vld [vmem:[#allocation5 + $0x10] sm:$0xff]
        %v524 = vld [vmem:[#allocation5 + $0x18] sm:$0xff]
        %v525 = vld [vmem:[#allocation5 + $0x20] sm:$0xff]
        %v526 = vld [vmem:[#allocation5 + $0x28] sm:$0xff]
        %v527 = vld [vmem:[#allocation5 + $0x30] sm:$0xff]
        %v528 = vld [vmem:[#allocation5 + $0x38] sm:$0xff]
        %v529 = vld [vmem:[%s4] sm:$0x3]
        %v531 = vlaneseq
        %v532 = vshrl.u32 %v531, 7
        %v533 = vsub.s32 0, %v532
        %v534 = vrot.slane %v529, %v533
        %v535 = vlaneseq
        %v536 = vshrl.u32 %v535, 7
        %v537 = vsub.s32 1, %v536
        %v538 = vrot.slane %v529, %v537
        %v549 = vunpack.c.l.b16 %v521
        %v550 = vunpack.c.h.b16 %v521
        %v551 = vunpack.c.l.b16 %v522
        %v552 = vunpack.c.h.b16 %v522
        %v553 = vunpack.c.l.b16 %v523
        %v554 = vunpack.c.h.b16 %v523
        %v555 = vunpack.c.l.b16 %v524
        %v556 = vunpack.c.h.b16 %v524
        %v557 = vunpack.c.l.b16 %v525
        %v558 = vunpack.c.h.b16 %v525
        %v559 = vunpack.c.l.b16 %v526
        %v560 = vunpack.c.h.b16 %v526
        %v561 = vunpack.c.l.b16 %v527
        %v562 = vunpack.c.h.b16 %v527
        %v563 = vunpack.c.l.b16 %v528
        %v564 = vunpack.c.h.b16 %v528
        %v565 = vpack.c.b16 %v551, %v549
        %v566 = vpack.c.b16 %v552, %v550
        %v567 = vpack.c.b16 %v555, %v553
        %v568 = vpack.c.b16 %v556, %v554
        %v569 = vpack.c.b16 %v559, %v557
        %v570 = vpack.c.b16 %v560, %v558
        %v571 = vpack.c.b16 %v563, %v561
        %v572 = vpack.c.b16 %v564, %v562
        %vm581 = vcmask 523264
        %v583 = vsel %vm581, %v520, 0
        %585 = vmatprep.subr.bf16.mxu0 %v566
        %586 = vmatpush1.bf16.msra.mxu0 %v565
        %587 = vmatprep.subr.bf16.mxu0 %v568
        %588 = vmatpush1.bf16.msra.mxu0 %v567
        %589 = vmatprep.subr.bf16.mxu0 %v570
        %590 = vmatpush1.bf16.msra.mxu0 %v569
        %591 = vmatprep.subr.bf16.mxu0 %v572
        %592 = vmatpush1.bf16.msra.mxu0 %v571
        %593 = vmatprep.subr.bf16.mxu0 0
        %594 = vmatpush1.bf16.msra.mxu0 0
        %595 = vmatprep.subr.bf16.mxu0 0
        %596 = vmatpush1.bf16.msra.mxu0 0
        %597 = vmatprep.subr.bf16.mxu0 0
        %598 = vmatpush1.bf16.msra.mxu0 0
        %599 = vmatprep.subr.bf16.mxu0 0
        %600 = vmatpush1.bf16.msra.mxu0 0
        %601 = vmatprep.subr.bf16.mxu0 0
        %602 = vmatpush1.bf16.msra.mxu0 0
        %603 = vmatprep.subr.bf16.mxu0 0
        %604 = vmatpush1.bf16.msra.mxu0 0
        %605 = vmatprep.subr.bf16.mxu0 0
        %606 = vmatpush1.bf16.msra.mxu0 0
        %607 = vmatprep.subr.bf16.mxu0 0
        %608 = vmatpush1.bf16.msra.mxu0 0
        %609 = vmatprep.subr.bf16.mxu0 0
        %610 = vmatpush1.bf16.msra.mxu0 0
        %611 = vmatprep.subr.bf16.mxu0 0
        %612 = vmatpush1.bf16.msra.mxu0 0
        %613 = vmatprep.subr.bf16.mxu0 0
        %614 = vmatpush1.bf16.msra.mxu0 0
        %615 = vmatprep.subr.bf16.mxu0 0
        %616 = vmatpush1.bf16.msra.mxu0 0
        %617 = vmatprep.mubr.bf16.mxu0 0
        %618 = vmatmul.mubr.bf16.gmra.mrb[0].mxu0 %v583
        %v619 = vpop.f32.mrb[0].mxu0
        %v620 = vadd.f32 %v534, %v619
        %v621 = vpop.f32.mrb[0].mxu0
        %v622 = vadd.f32 %v538, %v621
        %v623 = vpop.f32.mrb[0].mxu0
        %v624 = vadd.f32 %v534, %v623
        %v625 = vpop.f32.mrb[0].mxu0
        %v626 = vadd.f32 %v538, %v625
        %627 = vdwg.mxu0
        %630 = vrot.lane.b32.xlu0 %v620, 112
        %v631 = vpop.permute.xlu0 %630
        %632 = vrot.lane.b32.xlu0 %v624, 112
        %v633 = vpop.permute.xlu0 %632
        %636 = vrot.lane.b32.xlu0 %v620, 96
        %v637 = vpop.permute.xlu0 %636
        %638 = vrot.lane.b32.xlu0 %v624, 96
        %v639 = vpop.permute.xlu0 %638
        %642 = vrot.lane.b32.xlu0 %v620, 80
        %v643 = vpop.permute.xlu0 %642
        %644 = vrot.lane.b32.xlu0 %v624, 80
        %v645 = vpop.permute.xlu0 %644
        %v648 = vcombine.low %v620, %v637
        %v649 = vcombine.high %v620, %v637
        %v651 = vunpack.c.l.s4 1983009808
        %v652 = vunpack.c.0.s8 %v651
        %v653 = vlaneseq
        %v654 = vshrl.u32 %v653, 7
        %v655 = vsub.s32 %v652, %v654
        %v656 = vrot.slane %v648, %v655
        %v658 = vunpack.c.l.s4 1983009808
        %v659 = vunpack.c.0.s8 %v658
        %v660 = vlaneseq
        %v661 = vshrl.u32 %v660, 7
        %v662 = vsub.s32 %v659, %v661
        %v663 = vrot.slane %v649, %v662
        %v664 = vcombine.low %v631, %v643
        %v665 = vcombine.high %v631, %v643
        %v667 = vunpack.c.l.s4 1983009808
        %v668 = vunpack.c.0.s8 %v667
        %v669 = vlaneseq
        %v670 = vshrl.u32 %v669, 7
        %v671 = vsub.s32 %v668, %v670
        %v672 = vrot.slane %v664, %v671
        %v674 = vunpack.c.l.s4 1983009808
        %v675 = vunpack.c.0.s8 %v674
        %v676 = vlaneseq
        %v677 = vshrl.u32 %v676, 7
        %v678 = vsub.s32 %v675, %v677
        %v679 = vrot.slane %v665, %v678
        %v680 = vcombine.low %v656, %v672
        %v681 = vcombine.high %v656, %v672
        %v683 = vunpack.c.l.s4 1934713408
        %v684 = vunpack.c.0.s8 %v683
        %v685 = vlaneseq
        %v686 = vshrl.u32 %v685, 7
        %v687 = vsub.s32 %v684, %v686
        %v688 = vrot.slane %v680, %v687
        %v690 = vunpack.c.l.s4 1934713408
        %v691 = vunpack.c.0.s8 %v690
        %v692 = vlaneseq
        %v693 = vshrl.u32 %v692, 7
        %v694 = vsub.s32 %v691, %v693
        %v695 = vrot.slane %v681, %v694
        %v696 = vcombine.low %v663, %v679
        %v697 = vcombine.high %v663, %v679
        %v699 = vunpack.c.l.s4 1934713408
        %v700 = vunpack.c.0.s8 %v699
        %v701 = vlaneseq
        %v702 = vshrl.u32 %v701, 7
        %v703 = vsub.s32 %v700, %v702
        %v704 = vrot.slane %v696, %v703
        %v706 = vunpack.c.l.s4 1934713408
        %v707 = vunpack.c.0.s8 %v706
        %v708 = vlaneseq
        %v709 = vshrl.u32 %v708, 7
        %v710 = vsub.s32 %v707, %v709
        %v711 = vrot.slane %v697, %v710
        %v712 = vcombine.high %v688, 0.0
        %v713 = vcombine.high %v695, 0.0
        %v714 = vcombine.high %v704, 0.0
        %v715 = vcombine.high %v711, 0.0
        %v716 = vcombine.low %v624, %v639
        %v717 = vcombine.high %v624, %v639
        %v719 = vunpack.c.l.s4 1983009808
        %v720 = vunpack.c.0.s8 %v719
        %v721 = vlaneseq
        %v722 = vshrl.u32 %v721, 7
        %v723 = vsub.s32 %v720, %v722
        %v724 = vrot.slane %v716, %v723
        %v726 = vunpack.c.l.s4 1983009808
        %v727 = vunpack.c.0.s8 %v726
        %v728 = vlaneseq
        %v729 = vshrl.u32 %v728, 7
        %v730 = vsub.s32 %v727, %v729
        %v731 = vrot.slane %v717, %v730
        %v732 = vcombine.low %v633, %v645
        %v733 = vcombine.high %v633, %v645
        %v735 = vunpack.c.l.s4 1983009808
        %v736 = vunpack.c.0.s8 %v735
        %v737 = vlaneseq
        %v738 = vshrl.u32 %v737, 7
        %v739 = vsub.s32 %v736, %v738
        %v740 = vrot.slane %v732, %v739
        %v742 = vunpack.c.l.s4 1983009808
        %v743 = vunpack.c.0.s8 %v742
        %v744 = vlaneseq
        %v745 = vshrl.u32 %v744, 7
        %v746 = vsub.s32 %v743, %v745
        %v747 = vrot.slane %v733, %v746
        %v748 = vcombine.low %v724, %v740
        %v749 = vcombine.high %v724, %v740
        %v751 = vunpack.c.l.s4 1934713408
        %v752 = vunpack.c.0.s8 %v751
        %v753 = vlaneseq
        %v754 = vshrl.u32 %v753, 7
        %v755 = vsub.s32 %v752, %v754
        %v756 = vrot.slane %v748, %v755
        %v758 = vunpack.c.l.s4 1934713408
        %v759 = vunpack.c.0.s8 %v758
        %v760 = vlaneseq
        %v761 = vshrl.u32 %v760, 7
        %v762 = vsub.s32 %v759, %v761
        %v763 = vrot.slane %v749, %v762
        %v764 = vcombine.low %v731, %v747
        %v765 = vcombine.high %v731, %v747
        %v767 = vunpack.c.l.s4 1934713408
        %v768 = vunpack.c.0.s8 %v767
        %v769 = vlaneseq
        %v770 = vshrl.u32 %v769, 7
        %v771 = vsub.s32 %v768, %v770
        %v772 = vrot.slane %v764, %v771
        %v774 = vunpack.c.l.s4 1934713408
        %v775 = vunpack.c.0.s8 %v774
        %v776 = vlaneseq
        %v777 = vshrl.u32 %v776, 7
        %v778 = vsub.s32 %v775, %v777
        %v779 = vrot.slane %v765, %v778
        %v780 = vcombine.high %v756, 0.0
        %v781 = vcombine.high %v763, 0.0
        %v782 = vcombine.high %v772, 0.0
        %v783 = vcombine.high %v779, 0.0
        %v784 = vcombine.low %v688, %v704
        %v786 = vunpack.c.l.s4 1983009808
        %v787 = vunpack.c.0.s8 %v786
        %v788 = vlaneseq
        %v789 = vshrl.u32 %v788, 7
        %v790 = vsub.s32 %v787, %v789
        %v791 = vrot.slane %v784, %v790
        %v792 = vcombine.low %v695, %v711
        %v794 = vunpack.c.l.s4 1983009808
        %v795 = vunpack.c.0.s8 %v794
        %v796 = vlaneseq
        %v797 = vshrl.u32 %v796, 7
        %v798 = vsub.s32 %v795, %v797
        %v799 = vrot.slane %v792, %v798
        %v800 = vcombine.low %v756, %v772
        %v802 = vunpack.c.l.s4 1983009808
        %v803 = vunpack.c.0.s8 %v802
        %v804 = vlaneseq
        %v805 = vshrl.u32 %v804, 7
        %v806 = vsub.s32 %v803, %v805
        %v807 = vrot.slane %v800, %v806
        %v808 = vcombine.low %v763, %v779
        %v810 = vunpack.c.l.s4 1983009808
        %v811 = vunpack.c.0.s8 %v810
        %v812 = vlaneseq
        %v813 = vshrl.u32 %v812, 7
        %v814 = vsub.s32 %v811, %v813
        %v815 = vrot.slane %v808, %v814
        %v816 = vcombine.low %v791, %v799
        %v817 = vcombine.high %v791, %v799
        %v819 = vunpack.c.l.s4 1934713408
        %v820 = vunpack.c.0.s8 %v819
        %v821 = vlaneseq
        %v822 = vshrl.u32 %v821, 7
        %v823 = vsub.s32 %v820, %v822
        %v824 = vrot.slane %v816, %v823
        %v826 = vunpack.c.l.s4 1934713408
        %v827 = vunpack.c.0.s8 %v826
        %v828 = vlaneseq
        %v829 = vshrl.u32 %v828, 7
        %v830 = vsub.s32 %v827, %v829
        %v831 = vrot.slane %v817, %v830
        %v832 = vcombine.low %v807, %v815
        %v833 = vcombine.high %v807, %v815
        %v835 = vunpack.c.l.s4 1934713408
        %v836 = vunpack.c.0.s8 %v835
        %v837 = vlaneseq
        %v838 = vshrl.u32 %v837, 7
        %v839 = vsub.s32 %v836, %v838
        %v840 = vrot.slane %v832, %v839
        %v842 = vunpack.c.l.s4 1934713408
        %v843 = vunpack.c.0.s8 %v842
        %v844 = vlaneseq
        %v845 = vshrl.u32 %v844, 7
        %v846 = vsub.s32 %v843, %v845
        %v847 = vrot.slane %v833, %v846
        %v848 = vcombine.low %v824, %v840
        %v849 = vcombine.high %v824, %v840
        %v850 = vcombine.low %v831, %v847
        %v851 = vcombine.high %v831, %v847
        %v852 = vcombine.low %v712, %v714
        %v854 = vunpack.c.l.s4 1983009808
        %v855 = vunpack.c.0.s8 %v854
        %v856 = vlaneseq
        %v857 = vshrl.u32 %v856, 7
        %v858 = vsub.s32 %v855, %v857
        %v859 = vrot.slane %v852, %v858
        %v860 = vcombine.low %v713, %v715
        %v862 = vunpack.c.l.s4 1983009808
        %v863 = vunpack.c.0.s8 %v862
        %v864 = vlaneseq
        %v865 = vshrl.u32 %v864, 7
        %v866 = vsub.s32 %v863, %v865
        %v867 = vrot.slane %v860, %v866
        %v868 = vcombine.low %v780, %v782
        %v870 = vunpack.c.l.s4 1983009808
        %v871 = vunpack.c.0.s8 %v870
        %v872 = vlaneseq
        %v873 = vshrl.u32 %v872, 7
        %v874 = vsub.s32 %v871, %v873
        %v875 = vrot.slane %v868, %v874
        %v876 = vcombine.low %v781, %v783
        %v878 = vunpack.c.l.s4 1983009808
        %v879 = vunpack.c.0.s8 %v878
        %v880 = vlaneseq
        %v881 = vshrl.u32 %v880, 7
        %v882 = vsub.s32 %v879, %v881
        %v883 = vrot.slane %v876, %v882
        %v884 = vcombine.low %v859, %v867
        %v885 = vcombine.high %v859, %v867
        %v887 = vunpack.c.l.s4 1934713408
        %v888 = vunpack.c.0.s8 %v887
        %v889 = vlaneseq
        %v890 = vshrl.u32 %v889, 7
        %v891 = vsub.s32 %v888, %v890
        %v892 = vrot.slane %v884, %v891
        %v894 = vunpack.c.l.s4 1934713408
        %v895 = vunpack.c.0.s8 %v894
        %v896 = vlaneseq
        %v897 = vshrl.u32 %v896, 7
        %v898 = vsub.s32 %v895, %v897
        %v899 = vrot.slane %v885, %v898
        %v900 = vcombine.low %v875, %v883
        %v901 = vcombine.high %v875, %v883
        %v903 = vunpack.c.l.s4 1934713408
        %v904 = vunpack.c.0.s8 %v903
        %v905 = vlaneseq
        %v906 = vshrl.u32 %v905, 7
        %v907 = vsub.s32 %v904, %v906
        %v908 = vrot.slane %v900, %v907
        %v910 = vunpack.c.l.s4 1934713408
        %v911 = vunpack.c.0.s8 %v910
        %v912 = vlaneseq
        %v913 = vshrl.u32 %v912, 7
        %v914 = vsub.s32 %v911, %v913
        %v915 = vrot.slane %v901, %v914
        %v916 = vcombine.low %v892, %v908
        %v917 = vcombine.high %v892, %v908
        %v918 = vcombine.low %v899, %v915
        %v919 = vcombine.high %v899, %v915
        %v920 = vpack.c.bf16 %v848, %v848
        %v921 = vpack.c.bf16 %v849, %v849
        %v922 = vpack.c.bf16 %v850, %v850
        %v923 = vpack.c.bf16 %v851, %v851
        %v924 = vpack.c.bf16 %v916, %v916
        %v925 = vpack.c.bf16 %v917, %v917
        %v926 = vpack.c.bf16 %v918, %v918
        %v927 = vpack.c.bf16 %v919, %v919
        %vm928 = vcmask 125952
        %929 = vst.msk [vmem:[%s315] sm:$0xf] %vm928, %v920
        %930 = vst.msk [vmem:[%s315 + $0x4] sm:$0xf] %vm928, %v921
        %931 = vst.msk [vmem:[%s315 + $0x8] sm:$0xf] %vm928, %v922
        %932 = vst.msk [vmem:[%s315 + $0xc] sm:$0xf] %vm928, %v923
        %933 = vst.msk [vmem:[%s315 + $0x10] sm:$0xf] %vm928, %v924
        %934 = vst.msk [vmem:[%s315 + $0x14] sm:$0xf] %vm928, %v925
        %935 = vst.msk [vmem:[%s315 + $0x18] sm:$0xf] %vm928, %v926
        %936 = vst.msk [vmem:[%s315 + $0x1c] sm:$0xf] %vm928, %v927
        %937 = vrot.lane.b32.xlu0 %v620, 64
        %v938 = vpop.permute.xlu0 %937
        %939 = vrot.lane.b32.xlu0 %v624, 64
        %v940 = vpop.permute.xlu0 %939
        %941 = vrot.lane.b32.xlu0 %v631, 64
        %v942 = vpop.permute.xlu0 %941
        %943 = vrot.lane.b32.xlu0 %v633, 64
        %v944 = vpop.permute.xlu0 %943
        %945 = vrot.lane.b32.xlu0 %v637, 64
        %v946 = vpop.permute.xlu0 %945
        %947 = vrot.lane.b32.xlu0 %v639, 64
        %v948 = vpop.permute.xlu0 %947
        %949 = vrot.lane.b32.xlu0 %v643, 64
        %v950 = vpop.permute.xlu0 %949
        %951 = vrot.lane.b32.xlu0 %v645, 64
        %v952 = vpop.permute.xlu0 %951
        %v961 = vcombine.low %v938, %v946
        %v962 = vcombine.high %v938, %v946
        %v964 = vunpack.c.l.s4 1983009808
        %v965 = vunpack.c.0.s8 %v964
        %v966 = vlaneseq
        %v967 = vshrl.u32 %v966, 7
        %v968 = vsub.s32 %v965, %v967
        %v969 = vrot.slane %v961, %v968
        %v971 = vunpack.c.l.s4 1983009808
        %v972 = vunpack.c.0.s8 %v971
        %v973 = vlaneseq
        %v974 = vshrl.u32 %v973, 7
        %v975 = vsub.s32 %v972, %v974
        %v976 = vrot.slane %v962, %v975
        %v977 = vcombine.low %v942, %v950
        %v978 = vcombine.high %v942, %v950
        %v980 = vunpack.c.l.s4 1983009808
        %v981 = vunpack.c.0.s8 %v980
        %v982 = vlaneseq
        %v983 = vshrl.u32 %v982, 7
        %v984 = vsub.s32 %v981, %v983
        %v985 = vrot.slane %v977, %v984
        %v987 = vunpack.c.l.s4 1983009808
        %v988 = vunpack.c.0.s8 %v987
        %v989 = vlaneseq
        %v990 = vshrl.u32 %v989, 7
        %v991 = vsub.s32 %v988, %v990
        %v992 = vrot.slane %v978, %v991
        %v993 = vcombine.low %v969, %v985
        %v994 = vcombine.high %v969, %v985
        %v996 = vunpack.c.l.s4 1934713408
        %v997 = vunpack.c.0.s8 %v996
        %v998 = vlaneseq
        %v999 = vshrl.u32 %v998, 7
        %v1000 = vsub.s32 %v997, %v999
        %v1001 = vrot.slane %v993, %v1000
        %v1003 = vunpack.c.l.s4 1934713408
        %v1004 = vunpack.c.0.s8 %v1003
        %v1005 = vlaneseq
        %v1006 = vshrl.u32 %v1005, 7
        %v1007 = vsub.s32 %v1004, %v1006
        %v1008 = vrot.slane %v994, %v1007
        %v1009 = vcombine.low %v976, %v992
        %v1010 = vcombine.high %v976, %v992
        %v1012 = vunpack.c.l.s4 1934713408
        %v1013 = vunpack.c.0.s8 %v1012
        %v1014 = vlaneseq
        %v1015 = vshrl.u32 %v1014, 7
        %v1016 = vsub.s32 %v1013, %v1015
        %v1017 = vrot.slane %v1009, %v1016
        %v1019 = vunpack.c.l.s4 1934713408
        %v1020 = vunpack.c.0.s8 %v1019
        %v1021 = vlaneseq
        %v1022 = vshrl.u32 %v1021, 7
        %v1023 = vsub.s32 %v1020, %v1022
        %v1024 = vrot.slane %v1010, %v1023
        %v1025 = vcombine.high %v1001, 0.0
        %v1026 = vcombine.high %v1008, 0.0
        %v1027 = vcombine.high %v1017, 0.0
        %v1028 = vcombine.high %v1024, 0.0
        %v1029 = vcombine.low %v940, %v948
        %v1030 = vcombine.high %v940, %v948
        %v1032 = vunpack.c.l.s4 1983009808
        %v1033 = vunpack.c.0.s8 %v1032
        %v1034 = vlaneseq
        %v1035 = vshrl.u32 %v1034, 7
        %v1036 = vsub.s32 %v1033, %v1035
        %v1037 = vrot.slane %v1029, %v1036
        %v1039 = vunpack.c.l.s4 1983009808
        %v1040 = vunpack.c.0.s8 %v1039
        %v1041 = vlaneseq
        %v1042 = vshrl.u32 %v1041, 7
        %v1043 = vsub.s32 %v1040, %v1042
        %v1044 = vrot.slane %v1030, %v1043
        %v1045 = vcombine.low %v944, %v952
        %v1046 = vcombine.high %v944, %v952
        %v1048 = vunpack.c.l.s4 1983009808
        %v1049 = vunpack.c.0.s8 %v1048
        %v1050 = vlaneseq
        %v1051 = vshrl.u32 %v1050, 7
        %v1052 = vsub.s32 %v1049, %v1051
        %v1053 = vrot.slane %v1045, %v1052
        %v1055 = vunpack.c.l.s4 1983009808
        %v1056 = vunpack.c.0.s8 %v1055
        %v1057 = vlaneseq
        %v1058 = vshrl.u32 %v1057, 7
        %v1059 = vsub.s32 %v1056, %v1058
        %v1060 = vrot.slane %v1046, %v1059
        %v1061 = vcombine.low %v1037, %v1053
        %v1062 = vcombine.high %v1037, %v1053
        %v1064 = vunpack.c.l.s4 1934713408
        %v1065 = vunpack.c.0.s8 %v1064
        %v1066 = vlaneseq
        %v1067 = vshrl.u32 %v1066, 7
        %v1068 = vsub.s32 %v1065, %v1067
        %v1069 = vrot.slane %v1061, %v1068
        %v1071 = vunpack.c.l.s4 1934713408
        %v1072 = vunpack.c.0.s8 %v1071
        %v1073 = vlaneseq
        %v1074 = vshrl.u32 %v1073, 7
        %v1075 = vsub.s32 %v1072, %v1074
        %v1076 = vrot.slane %v1062, %v1075
        %v1077 = vcombine.low %v1044, %v1060
        %v1078 = vcombine.high %v1044, %v1060
        %v1080 = vunpack.c.l.s4 1934713408
        %v1081 = vunpack.c.0.s8 %v1080
        %v1082 = vlaneseq
        %v1083 = vshrl.u32 %v1082, 7
        %v1084 = vsub.s32 %v1081, %v1083
        %v1085 = vrot.slane %v1077, %v1084
        %v1087 = vunpack.c.l.s4 1934713408
        %v1088 = vunpack.c.0.s8 %v1087
        %v1089 = vlaneseq
        %v1090 = vshrl.u32 %v1089, 7
        %v1091 = vsub.s32 %v1088, %v1090
        %v1092 = vrot.slane %v1078, %v1091
        %v1093 = vcombine.high %v1069, 0.0
        %v1094 = vcombine.high %v1076, 0.0
        %v1095 = vcombine.high %v1085, 0.0
        %v1096 = vcombine.high %v1092, 0.0
        %v1097 = vcombine.low %v1001, %v1017
        %v1099 = vunpack.c.l.s4 1983009808
        %v1100 = vunpack.c.0.s8 %v1099
        %v1101 = vlaneseq
        %v1102 = vshrl.u32 %v1101, 7
        %v1103 = vsub.s32 %v1100, %v1102
        %v1104 = vrot.slane %v1097, %v1103
        %v1105 = vcombine.low %v1008, %v1024
        %v1107 = vunpack.c.l.s4 1983009808
        %v1108 = vunpack.c.0.s8 %v1107
        %v1109 = vlaneseq
        %v1110 = vshrl.u32 %v1109, 7
        %v1111 = vsub.s32 %v1108, %v1110
        %v1112 = vrot.slane %v1105, %v1111
        %v1113 = vcombine.low %v1069, %v1085
        %v1115 = vunpack.c.l.s4 1983009808
        %v1116 = vunpack.c.0.s8 %v1115
        %v1117 = vlaneseq
        %v1118 = vshrl.u32 %v1117, 7
        %v1119 = vsub.s32 %v1116, %v1118
        %v1120 = vrot.slane %v1113, %v1119
        %v1121 = vcombine.low %v1076, %v1092
        %v1123 = vunpack.c.l.s4 1983009808
        %v1124 = vunpack.c.0.s8 %v1123
        %v1125 = vlaneseq
        %v1126 = vshrl.u32 %v1125, 7
        %v1127 = vsub.s32 %v1124, %v1126
        %v1128 = vrot.slane %v1121, %v1127
        %v1129 = vcombine.low %v1104, %v1112
        %v1130 = vcombine.high %v1104, %v1112
        %v1132 = vunpack.c.l.s4 1934713408
        %v1133 = vunpack.c.0.s8 %v1132
        %v1134 = vlaneseq
        %v1135 = vshrl.u32 %v1134, 7
        %v1136 = vsub.s32 %v1133, %v1135
        %v1137 = vrot.slane %v1129, %v1136
        %v1139 = vunpack.c.l.s4 1934713408
        %v1140 = vunpack.c.0.s8 %v1139
        %v1141 = vlaneseq
        %v1142 = vshrl.u32 %v1141, 7
        %v1143 = vsub.s32 %v1140, %v1142
        %v1144 = vrot.slane %v1130, %v1143
        %v1145 = vcombine.low %v1120, %v1128
        %v1146 = vcombine.high %v1120, %v1128
        %v1148 = vunpack.c.l.s4 1934713408
        %v1149 = vunpack.c.0.s8 %v1148
        %v1150 = vlaneseq
        %v1151 = vshrl.u32 %v1150, 7
        %v1152 = vsub.s32 %v1149, %v1151
        %v1153 = vrot.slane %v1145, %v1152
        %v1155 = vunpack.c.l.s4 1934713408
        %v1156 = vunpack.c.0.s8 %v1155
        %v1157 = vlaneseq
        %v1158 = vshrl.u32 %v1157, 7
        %v1159 = vsub.s32 %v1156, %v1158
        %v1160 = vrot.slane %v1146, %v1159
        %v1161 = vcombine.low %v1137, %v1153
        %v1162 = vcombine.high %v1137, %v1153
        %v1163 = vcombine.low %v1144, %v1160
        %v1164 = vcombine.high %v1144, %v1160
        %v1165 = vcombine.low %v1025, %v1027
        %v1167 = vunpack.c.l.s4 1983009808
        %v1168 = vunpack.c.0.s8 %v1167
        %v1169 = vlaneseq
        %v1170 = vshrl.u32 %v1169, 7
        %v1171 = vsub.s32 %v1168, %v1170
        %v1172 = vrot.slane %v1165, %v1171
        %v1173 = vcombine.low %v1026, %v1028
        %v1175 = vunpack.c.l.s4 1983009808
        %v1176 = vunpack.c.0.s8 %v1175
        %v1177 = vlaneseq
        %v1178 = vshrl.u32 %v1177, 7
        %v1179 = vsub.s32 %v1176, %v1178
        %v1180 = vrot.slane %v1173, %v1179
        %v1181 = vcombine.low %v1093, %v1095
        %v1183 = vunpack.c.l.s4 1983009808
        %v1184 = vunpack.c.0.s8 %v1183
        %v1185 = vlaneseq
        %v1186 = vshrl.u32 %v1185, 7
        %v1187 = vsub.s32 %v1184, %v1186
        %v1188 = vrot.slane %v1181, %v1187
        %v1189 = vcombine.low %v1094, %v1096
        %v1191 = vunpack.c.l.s4 1983009808
        %v1192 = vunpack.c.0.s8 %v1191
        %v1193 = vlaneseq
        %v1194 = vshrl.u32 %v1193, 7
        %v1195 = vsub.s32 %v1192, %v1194
        %v1196 = vrot.slane %v1189, %v1195
        %v1197 = vcombine.low %v1172, %v1180
        %v1198 = vcombine.high %v1172, %v1180
        %v1200 = vunpack.c.l.s4 1934713408
        %v1201 = vunpack.c.0.s8 %v1200
        %v1202 = vlaneseq
        %v1203 = vshrl.u32 %v1202, 7
        %v1204 = vsub.s32 %v1201, %v1203
        %v1205 = vrot.slane %v1197, %v1204
        %v1207 = vunpack.c.l.s4 1934713408
        %v1208 = vunpack.c.0.s8 %v1207
        %v1209 = vlaneseq
        %v1210 = vshrl.u32 %v1209, 7
        %v1211 = vsub.s32 %v1208, %v1210
        %v1212 = vrot.slane %v1198, %v1211
        %v1213 = vcombine.low %v1188, %v1196
        %v1214 = vcombine.high %v1188, %v1196
        %v1216 = vunpack.c.l.s4 1934713408
        %v1217 = vunpack.c.0.s8 %v1216
        %v1218 = vlaneseq
        %v1219 = vshrl.u32 %v1218, 7
        %v1220 = vsub.s32 %v1217, %v1219
        %v1221 = vrot.slane %v1213, %v1220
        %v1223 = vunpack.c.l.s4 1934713408
        %v1224 = vunpack.c.0.s8 %v1223
        %v1225 = vlaneseq
        %v1226 = vshrl.u32 %v1225, 7
        %v1227 = vsub.s32 %v1224, %v1226
        %v1228 = vrot.slane %v1214, %v1227
        %v1229 = vcombine.low %v1205, %v1221
        %v1230 = vcombine.high %v1205, %v1221
        %v1231 = vcombine.low %v1212, %v1228
        %v1232 = vcombine.high %v1212, %v1228
        %v1233 = vpack.c.bf16 %v1161, %v1161
        %v1234 = vpack.c.bf16 %v1162, %v1162
        %v1235 = vpack.c.bf16 %v1163, %v1163
        %v1236 = vpack.c.bf16 %v1164, %v1164
        %v1237 = vpack.c.bf16 %v1229, %v1229
        %v1238 = vpack.c.bf16 %v1230, %v1230
        %v1239 = vpack.c.bf16 %v1231, %v1231
        %v1240 = vpack.c.bf16 %v1232, %v1232
        %1241 = vst.msk [vmem:[%s322] sm:$0xf] %vm928, %v1233
        %1242 = vst.msk [vmem:[%s322 + $0x4] sm:$0xf] %vm928, %v1234
        %1243 = vst.msk [vmem:[%s322 + $0x8] sm:$0xf] %vm928, %v1235
        %1244 = vst.msk [vmem:[%s322 + $0xc] sm:$0xf] %vm928, %v1236
        %1245 = vst.msk [vmem:[%s322 + $0x10] sm:$0xf] %vm928, %v1237
        %1246 = vst.msk [vmem:[%s322 + $0x14] sm:$0xf] %vm928, %v1238
        %1247 = vst.msk [vmem:[%s322 + $0x18] sm:$0xf] %vm928, %v1239
        %1248 = vst.msk [vmem:[%s322 + $0x1c] sm:$0xf] %vm928, %v1240
        %1251 = vrot.lane.b32.xlu0 %v622, 112
        %v1252 = vpop.permute.xlu0 %1251
        %1253 = vrot.lane.b32.xlu0 %v626, 112
        %v1254 = vpop.permute.xlu0 %1253
        %1257 = vrot.lane.b32.xlu0 %v622, 96
        %v1258 = vpop.permute.xlu0 %1257
        %1259 = vrot.lane.b32.xlu0 %v626, 96
        %v1260 = vpop.permute.xlu0 %1259
        %1263 = vrot.lane.b32.xlu0 %v622, 80
        %v1264 = vpop.permute.xlu0 %1263
        %1265 = vrot.lane.b32.xlu0 %v626, 80
        %v1266 = vpop.permute.xlu0 %1265
        %v1269 = vcombine.low %v622, %v1258
        %v1270 = vcombine.high %v622, %v1258
        %v1272 = vunpack.c.l.s4 1983009808
        %v1273 = vunpack.c.0.s8 %v1272
        %v1274 = vlaneseq
        %v1275 = vshrl.u32 %v1274, 7
        %v1276 = vsub.s32 %v1273, %v1275
        %v1277 = vrot.slane %v1269, %v1276
        %v1279 = vunpack.c.l.s4 1983009808
        %v1280 = vunpack.c.0.s8 %v1279
        %v1281 = vlaneseq
        %v1282 = vshrl.u32 %v1281, 7
        %v1283 = vsub.s32 %v1280, %v1282
        %v1284 = vrot.slane %v1270, %v1283
        %v1285 = vcombine.low %v1252, %v1264
        %v1286 = vcombine.high %v1252, %v1264
        %v1288 = vunpack.c.l.s4 1983009808
        %v1289 = vunpack.c.0.s8 %v1288
        %v1290 = vlaneseq
        %v1291 = vshrl.u32 %v1290, 7
        %v1292 = vsub.s32 %v1289, %v1291
        %v1293 = vrot.slane %v1285, %v1292
        %v1295 = vunpack.c.l.s4 1983009808
        %v1296 = vunpack.c.0.s8 %v1295
        %v1297 = vlaneseq
        %v1298 = vshrl.u32 %v1297, 7
        %v1299 = vsub.s32 %v1296, %v1298
        %v1300 = vrot.slane %v1286, %v1299
        %v1301 = vcombine.low %v1277, %v1293
        %v1302 = vcombine.high %v1277, %v1293
        %v1304 = vunpack.c.l.s4 1934713408
        %v1305 = vunpack.c.0.s8 %v1304
        %v1306 = vlaneseq
        %v1307 = vshrl.u32 %v1306, 7
        %v1308 = vsub.s32 %v1305, %v1307
        %v1309 = vrot.slane %v1301, %v1308
        %v1311 = vunpack.c.l.s4 1934713408
        %v1312 = vunpack.c.0.s8 %v1311
        %v1313 = vlaneseq
        %v1314 = vshrl.u32 %v1313, 7
        %v1315 = vsub.s32 %v1312, %v1314
        %v1316 = vrot.slane %v1302, %v1315
        %v1317 = vcombine.low %v1284, %v1300
        %v1318 = vcombine.high %v1284, %v1300
        %v1320 = vunpack.c.l.s4 1934713408
        %v1321 = vunpack.c.0.s8 %v1320
        %v1322 = vlaneseq
        %v1323 = vshrl.u32 %v1322, 7
        %v1324 = vsub.s32 %v1321, %v1323
        %v1325 = vrot.slane %v1317, %v1324
        %v1327 = vunpack.c.l.s4 1934713408
        %v1328 = vunpack.c.0.s8 %v1327
        %v1329 = vlaneseq
        %v1330 = vshrl.u32 %v1329, 7
        %v1331 = vsub.s32 %v1328, %v1330
        %v1332 = vrot.slane %v1318, %v1331
        %v1333 = vcombine.high %v1309, 0.0
        %v1334 = vcombine.high %v1316, 0.0
        %v1335 = vcombine.high %v1325, 0.0
        %v1336 = vcombine.high %v1332, 0.0
        %v1337 = vcombine.low %v626, %v1260
        %v1338 = vcombine.high %v626, %v1260
        %v1340 = vunpack.c.l.s4 1983009808
        %v1341 = vunpack.c.0.s8 %v1340
        %v1342 = vlaneseq
        %v1343 = vshrl.u32 %v1342, 7
        %v1344 = vsub.s32 %v1341, %v1343
        %v1345 = vrot.slane %v1337, %v1344
        %v1347 = vunpack.c.l.s4 1983009808
        %v1348 = vunpack.c.0.s8 %v1347
        %v1349 = vlaneseq
        %v1350 = vshrl.u32 %v1349, 7
        %v1351 = vsub.s32 %v1348, %v1350
        %v1352 = vrot.slane %v1338, %v1351
        %v1353 = vcombine.low %v1254, %v1266
        %v1354 = vcombine.high %v1254, %v1266
        %v1356 = vunpack.c.l.s4 1983009808
        %v1357 = vunpack.c.0.s8 %v1356
        %v1358 = vlaneseq
        %v1359 = vshrl.u32 %v1358, 7
        %v1360 = vsub.s32 %v1357, %v1359
        %v1361 = vrot.slane %v1353, %v1360
        %v1363 = vunpack.c.l.s4 1983009808
        %v1364 = vunpack.c.0.s8 %v1363
        %v1365 = vlaneseq
        %v1366 = vshrl.u32 %v1365, 7
        %v1367 = vsub.s32 %v1364, %v1366
        %v1368 = vrot.slane %v1354, %v1367
        %v1369 = vcombine.low %v1345, %v1361
        %v1370 = vcombine.high %v1345, %v1361
        %v1372 = vunpack.c.l.s4 1934713408
        %v1373 = vunpack.c.0.s8 %v1372
        %v1374 = vlaneseq
        %v1375 = vshrl.u32 %v1374, 7
        %v1376 = vsub.s32 %v1373, %v1375
        %v1377 = vrot.slane %v1369, %v1376
        %v1379 = vunpack.c.l.s4 1934713408
        %v1380 = vunpack.c.0.s8 %v1379
        %v1381 = vlaneseq
        %v1382 = vshrl.u32 %v1381, 7
        %v1383 = vsub.s32 %v1380, %v1382
        %v1384 = vrot.slane %v1370, %v1383
        %v1385 = vcombine.low %v1352, %v1368
        %v1386 = vcombine.high %v1352, %v1368
        %v1388 = vunpack.c.l.s4 1934713408
        %v1389 = vunpack.c.0.s8 %v1388
        %v1390 = vlaneseq
        %v1391 = vshrl.u32 %v1390, 7
        %v1392 = vsub.s32 %v1389, %v1391
        %v1393 = vrot.slane %v1385, %v1392
        %v1395 = vunpack.c.l.s4 1934713408
        %v1396 = vunpack.c.0.s8 %v1395
        %v1397 = vlaneseq
        %v1398 = vshrl.u32 %v1397, 7
        %v1399 = vsub.s32 %v1396, %v1398
        %v1400 = vrot.slane %v1386, %v1399
        %v1401 = vcombine.high %v1377, 0.0
        %v1402 = vcombine.high %v1384, 0.0
        %v1403 = vcombine.high %v1393, 0.0
        %v1404 = vcombine.high %v1400, 0.0
        %v1405 = vcombine.low %v1309, %v1325
        %v1407 = vunpack.c.l.s4 1983009808
        %v1408 = vunpack.c.0.s8 %v1407
        %v1409 = vlaneseq
        %v1410 = vshrl.u32 %v1409, 7
        %v1411 = vsub.s32 %v1408, %v1410
        %v1412 = vrot.slane %v1405, %v1411
        %v1413 = vcombine.low %v1316, %v1332
        %v1415 = vunpack.c.l.s4 1983009808
        %v1416 = vunpack.c.0.s8 %v1415
        %v1417 = vlaneseq
        %v1418 = vshrl.u32 %v1417, 7
        %v1419 = vsub.s32 %v1416, %v1418
        %v1420 = vrot.slane %v1413, %v1419
        %v1421 = vcombine.low %v1377, %v1393
        %v1423 = vunpack.c.l.s4 1983009808
        %v1424 = vunpack.c.0.s8 %v1423
        %v1425 = vlaneseq
        %v1426 = vshrl.u32 %v1425, 7
        %v1427 = vsub.s32 %v1424, %v1426
        %v1428 = vrot.slane %v1421, %v1427
        %v1429 = vcombine.low %v1384, %v1400
        %v1431 = vunpack.c.l.s4 1983009808
        %v1432 = vunpack.c.0.s8 %v1431
        %v1433 = vlaneseq
        %v1434 = vshrl.u32 %v1433, 7
        %v1435 = vsub.s32 %v1432, %v1434
        %v1436 = vrot.slane %v1429, %v1435
        %v1437 = vcombine.low %v1412, %v1420
        %v1438 = vcombine.high %v1412, %v1420
        %v1440 = vunpack.c.l.s4 1934713408
        %v1441 = vunpack.c.0.s8 %v1440
        %v1442 = vlaneseq
        %v1443 = vshrl.u32 %v1442, 7
        %v1444 = vsub.s32 %v1441, %v1443
        %v1445 = vrot.slane %v1437, %v1444
        %v1447 = vunpack.c.l.s4 1934713408
        %v1448 = vunpack.c.0.s8 %v1447
        %v1449 = vlaneseq
        %v1450 = vshrl.u32 %v1449, 7
        %v1451 = vsub.s32 %v1448, %v1450
        %v1452 = vrot.slane %v1438, %v1451
        %v1453 = vcombine.low %v1428, %v1436
        %v1454 = vcombine.high %v1428, %v1436
        %v1456 = vunpack.c.l.s4 1934713408
        %v1457 = vunpack.c.0.s8 %v1456
        %v1458 = vlaneseq
        %v1459 = vshrl.u32 %v1458, 7
        %v1460 = vsub.s32 %v1457, %v1459
        %v1461 = vrot.slane %v1453, %v1460
        %v1463 = vunpack.c.l.s4 1934713408
        %v1464 = vunpack.c.0.s8 %v1463
        %v1465 = vlaneseq
        %v1466 = vshrl.u32 %v1465, 7
        %v1467 = vsub.s32 %v1464, %v1466
        %v1468 = vrot.slane %v1454, %v1467
        %v1469 = vcombine.low %v1445, %v1461
        %v1470 = vcombine.high %v1445, %v1461
        %v1471 = vcombine.low %v1452, %v1468
        %v1472 = vcombine.high %v1452, %v1468
        %v1473 = vcombine.low %v1333, %v1335
        %v1475 = vunpack.c.l.s4 1983009808
        %v1476 = vunpack.c.0.s8 %v1475
        %v1477 = vlaneseq
        %v1478 = vshrl.u32 %v1477, 7
        %v1479 = vsub.s32 %v1476, %v1478
        %v1480 = vrot.slane %v1473, %v1479
        %v1481 = vcombine.low %v1334, %v1336
        %v1483 = vunpack.c.l.s4 1983009808
        %v1484 = vunpack.c.0.s8 %v1483
        %v1485 = vlaneseq
        %v1486 = vshrl.u32 %v1485, 7
        %v1487 = vsub.s32 %v1484, %v1486
        %v1488 = vrot.slane %v1481, %v1487
        %v1489 = vcombine.low %v1401, %v1403
        %v1491 = vunpack.c.l.s4 1983009808
        %v1492 = vunpack.c.0.s8 %v1491
        %v1493 = vlaneseq
        %v1494 = vshrl.u32 %v1493, 7
        %v1495 = vsub.s32 %v1492, %v1494
        %v1496 = vrot.slane %v1489, %v1495
        %v1497 = vcombine.low %v1402, %v1404
        %v1499 = vunpack.c.l.s4 1983009808
        %v1500 = vunpack.c.0.s8 %v1499
        %v1501 = vlaneseq
        %v1502 = vshrl.u32 %v1501, 7
        %v1503 = vsub.s32 %v1500, %v1502
        %v1504 = vrot.slane %v1497, %v1503
        %v1505 = vcombine.low %v1480, %v1488
        %v1506 = vcombine.high %v1480, %v1488
        %v1508 = vunpack.c.l.s4 1934713408
        %v1509 = vunpack.c.0.s8 %v1508
        %v1510 = vlaneseq
        %v1511 = vshrl.u32 %v1510, 7
        %v1512 = vsub.s32 %v1509, %v1511
        %v1513 = vrot.slane %v1505, %v1512
        %v1515 = vunpack.c.l.s4 1934713408
        %v1516 = vunpack.c.0.s8 %v1515
        %v1517 = vlaneseq
        %v1518 = vshrl.u32 %v1517, 7
        %v1519 = vsub.s32 %v1516, %v1518
        %v1520 = vrot.slane %v1506, %v1519
        %v1521 = vcombine.low %v1496, %v1504
        %v1522 = vcombine.high %v1496, %v1504
        %v1524 = vunpack.c.l.s4 1934713408
        %v1525 = vunpack.c.0.s8 %v1524
        %v1526 = vlaneseq
        %v1527 = vshrl.u32 %v1526, 7
        %v1528 = vsub.s32 %v1525, %v1527
        %v1529 = vrot.slane %v1521, %v1528
        %v1531 = vunpack.c.l.s4 1934713408
        %v1532 = vunpack.c.0.s8 %v1531
        %v1533 = vlaneseq
        %v1534 = vshrl.u32 %v1533, 7
        %v1535 = vsub.s32 %v1532, %v1534
        %v1536 = vrot.slane %v1522, %v1535
        %v1537 = vcombine.low %v1513, %v1529
        %v1538 = vcombine.high %v1513, %v1529
        %v1539 = vcombine.low %v1520, %v1536
        %v1540 = vcombine.high %v1520, %v1536
        %v1541 = vpack.c.bf16 %v1469, %v1469
        %v1542 = vpack.c.bf16 %v1470, %v1470
        %v1543 = vpack.c.bf16 %v1471, %v1471
        %v1544 = vpack.c.bf16 %v1472, %v1472
        %v1545 = vpack.c.bf16 %v1537, %v1537
        %v1546 = vpack.c.bf16 %v1538, %v1538
        %v1547 = vpack.c.bf16 %v1539, %v1539
        %v1548 = vpack.c.bf16 %v1540, %v1540
        %1549 = vst.msk [vmem:[%s329] sm:$0xf] %vm928, %v1541
        %1550 = vst.msk [vmem:[%s329 + $0x4] sm:$0xf] %vm928, %v1542
        %1551 = vst.msk [vmem:[%s329 + $0x8] sm:$0xf] %vm928, %v1543
        %1552 = vst.msk [vmem:[%s329 + $0xc] sm:$0xf] %vm928, %v1544
        %1553 = vst.msk [vmem:[%s329 + $0x10] sm:$0xf] %vm928, %v1545
        %1554 = vst.msk [vmem:[%s329 + $0x14] sm:$0xf] %vm928, %v1546
        %1555 = vst.msk [vmem:[%s329 + $0x18] sm:$0xf] %vm928, %v1547
        %1556 = vst.msk [vmem:[%s329 + $0x1c] sm:$0xf] %vm928, %v1548
        %s1557 = sand.u32 %s147, 1
        %s1558 = scalar_lea.sflag [#allocation4], %s1557
        %s1559 = sand.u32 %s147, 1
        %s1560 = smul.addr %s1559, 32
        %s1561 = scalar_lea.vmem [#allocation7], %s1560
        %s1562 = sand.u32 %s29, 1
        %s1563 = scalar_lea.sflag [#allocation9], %s1562
        %s1564 = sand.u32 %s173, 1
        %s1565 = smul.addr %s1564, 32
        %s1566 = scalar_lea.vmem [#allocation8], %s1565
        %s1567 = sand.u32 %s29, 1
        %s1568 = scalar_lea.sflag [#allocation9], %s1567
        %s1569 = sand.u32 %s199, 1
        %s1570 = smul.addr %s1569, 32
        %s1571 = scalar_lea.vmem [#allocation10], %s1570
        // Predicated region
        $region49: #{tpu_custom_call.1} parent=39 // pred_check
          %p1572 = pneg %p157
        $region50: #{tpu_custom_call.1} parent=39 // pred_check_branch
          %1574 = sbr.rel (%p1572) target = $region52
        $region51: #{tpu_custom_call.1} parent=39 // pred_region
          %s1576 = ssub.s32 512, 512
          %1577 = vsyncadd %s1558, %s1576
          %s1578 = smul.addr %s29, 64
          %s1579 = scalar_lea.hbm %s5, %s1578
          %s1580 = sshll.u32 %s1561, 4
          %s1581 = int_to_ptr.vmem [resolvable:$true] %s1580
          %1586 = dma.vmem_to_hbm [thread:$0]  %s1581, 512, %s1579, %s1558, 64, 128, 4
        $region52: #{tpu_custom_call.1} parent=39 // pred_fallthru
          _
        // Predicated region
        $region53: #{tpu_custom_call.1} parent=39 // pred_check
          %p1587 = pneg %p183
        $region54: #{tpu_custom_call.1} parent=39 // pred_check_branch
          %1589 = sbr.rel (%p1587) target = $region56
        $region55: #{tpu_custom_call.1} parent=39 // pred_region
          %s1591 = ssub.s32 512, 512
          %1592 = vsyncadd %s1563, %s1591
          %s1593 = smul.addr %s29, 64
          %s1594 = scalar_lea.hbm %s6, %s1593
          %s1595 = sshll.u32 %s1566, 4
          %s1596 = int_to_ptr.vmem [resolvable:$true] %s1595
          %1601 = dma.vmem_to_hbm [thread:$0]  %s1596, 512, %s1594, %s1563, 64, 128, 4
        $region56: #{tpu_custom_call.1} parent=39 // pred_fallthru
          _
        // Predicated region
        $region57: #{tpu_custom_call.1} parent=39 // pred_check
          %p1602 = pneg %p209
        $region58: #{tpu_custom_call.1} parent=39 // pred_check_branch
          %1604 = sbr.rel (%p1602) target = $region60
        $region59: #{tpu_custom_call.1} parent=39 // pred_region
          %s1606 = ssub.s32 512, 512
          %1607 = vsyncadd %s1568, %s1606
          %s1608 = smul.addr %s29, 64
          %s1609 = scalar_lea.hbm %s7, %s1608
          %s1610 = sshll.u32 %s1571, 4
          %s1611 = int_to_ptr.vmem [resolvable:$true] %s1610
          %1616 = dma.vmem_to_hbm [thread:$0]  %s1611, 512, %s1609, %s1568, 64, 128, 4
        $region60: #{tpu_custom_call.1} parent=39 // pred_fallthru
          _
      $region40: #{tpu_custom_call.1} parent=5 // pred_fallthru
        _
      %p1617 = scmp.le.s32.totalorder 2, %s24
      // Predicated region
      $region61: #{tpu_custom_call.1} parent=5 // pred_check
        %p1618 = pneg %p1617
      $region62: #{tpu_custom_call.1} parent=5 // pred_check_branch
        %1620 = sbr.rel (%p1618) target = $region64
      $region63: #{tpu_custom_call.1} parent=5 // pred_region
        %s1621 = ssub.s32 %s24, 2
        // Predicated region
        $region65: #{tpu_custom_call.1} parent=63 // pred_check
          %p1622 = pneg %p163
        $region66: #{tpu_custom_call.1} parent=63 // pred_check_branch
          %1624 = sbr.rel (%p1622) target = $region68
        $region67: #{tpu_custom_call.1} parent=63 // pred_region
          %s1625 = sand.u32 %s148, 1
          %s1626 = scalar_lea.sflag [#allocation4], %s1625
          %s1627 = sand.u32 %s148, 1
          %s1628 = smul.addr %s1627, 32
          %s1629 = scalar_lea.vmem [#allocation7], %s1628
          %1630 = dma.done %s1626, 512
        $region68: #{tpu_custom_call.1} parent=63 // pred_fallthru
          _
        // Predicated region
        $region69: #{tpu_custom_call.1} parent=63 // pred_check
          %p1631 = pneg %p189
        $region70: #{tpu_custom_call.1} parent=63 // pred_check_branch
          %1633 = sbr.rel (%p1631) target = $region72
        $region71: #{tpu_custom_call.1} parent=63 // pred_region
          %s1634 = sand.u32 %s30, 1
          %s1635 = scalar_lea.sflag [#allocation9], %s1634
          %s1636 = sand.u32 %s174, 1
          %s1637 = smul.addr %s1636, 32
          %s1638 = scalar_lea.vmem [#allocation8], %s1637
          %1639 = dma.done %s1635, 512
        $region72: #{tpu_custom_call.1} parent=63 // pred_fallthru
          _
        // Predicated region
        $region73: #{tpu_custom_call.1} parent=63 // pred_check
          %p1640 = pneg %p215
        $region74: #{tpu_custom_call.1} parent=63 // pred_check_branch
          %1642 = sbr.rel (%p1640) target = $region76
        $region75: #{tpu_custom_call.1} parent=63 // pred_region
          %s1643 = sand.u32 %s30, 1
          %s1644 = scalar_lea.sflag [#allocation9], %s1643
          %s1645 = sand.u32 %s200, 1
          %s1646 = smul.addr %s1645, 32
          %s1647 = scalar_lea.vmem [#allocation10], %s1646
          %1648 = dma.done %s1644, 512
        $region76: #{tpu_custom_call.1} parent=63 // pred_fallthru
          _
      $region64: #{tpu_custom_call.1} parent=5 // pred_fallthru
        _
    $region6: #{tpu_custom_call.1} parent=1 // loop_footer
      %s28 = sadd.s32 1, %s24
    $region7: #{tpu_custom_call.1} parent=1 // loop_footer_branch
      %23 = sbr.rel target = $region3
    $region8: #{tpu_custom_call.1} parent=1 // loop_exit
      _
    %1649 = vsyncpa [#allocation3], 1
    %s1650 = scalar_lea.sflag [#allocation3], 1
    %1651 = vsyncpa %s1650, 1
    %1652 = vsyncpa [#allocation6], 1
    %1653 = vsyncpa [#allocation4], 1
    %s1654 = scalar_lea.sflag [#allocation4], 1
    %1655 = vsyncpa %s1654, 1
    %1656 = vsyncpa [#allocation9], 1
    %s1657 = scalar_lea.sflag [#allocation9], 1
    %1658 = vsyncpa %s1657, 1

</llo_original>
